<compile_context>
chip_gen: v7x
topology: tpu7x:2x2x1
jax: 0.10.0
libtpu: 0.0.40
codegen_flags: <defaults>
</compile_context>

<pallas_src>
import functools
import math

import jax
import jax.numpy as jnp
from jax.experimental import pallas as pl
from jax.experimental.pallas import tpu as pltpu


def _fmix32(h):
    """murmur3 finalizer: cheap full-avalanche mix of a uint32."""
    h = h ^ (h >> 16)
    h = h * jnp.uint32(0x85EBCA6B)
    h = h ^ (h >> 13)
    h = h * jnp.uint32(0xC2B2AE35)
    h = h ^ (h >> 16)
    return h


def _ffn_kernel(seed_ref, x_ref, w1_ref, b1_ref, w2_ref, b2_ref, o_ref, acc_ref,
                *, p, tile_m, tile_f, n_ff_total):
    i = pl.program_id(0)          # row-tile index      ("parallel")
    j = pl.program_id(1)          # d_ff-tile index     (reduction, "arbitrary")

    @pl.when(j == 0)
    def _():
        acc_ref[...] = jnp.zeros_like(acc_ref)

    # ---- matmul 1 + bias + ReLU (intermediate stays in VMEM, f32) ----------
    h = jnp.dot(x_ref[...], w1_ref[...],
                preferred_element_type=jnp.float32,
                precision=jax.lax.Precision.HIGHEST)
    h = jnp.maximum(h + b1_ref[...].astype(jnp.float32), 0.0)

    # ---- inverted dropout via tiling-independent counter hash --------------
    if p > 0.0:
        seed = seed_ref[0].astype(jnp.uint32)
        row0 = (i * tile_m).astype(jnp.uint32)
        col0 = (j * tile_f).astype(jnp.uint32)
        r = jax.lax.broadcasted_iota(jnp.int32, h.shape, 0).astype(jnp.uint32) + row0
        c = jax.lax.broadcasted_iota(jnp.int32, h.shape, 1).astype(jnp.uint32) + col0
        z = r * jnp.uint32(n_ff_total) + c                 # global element counter
        z = _fmix32(z + seed * jnp.uint32(0x9E3779B9))
        z = _fmix32(z ^ seed)
        thresh = jnp.uint32(min(int(round(p * 2.0 ** 32)), 2 ** 32 - 1))
        keep = z >= thresh                                  # P(keep) = 1 - p
        h = jnp.where(keep, h * jnp.float32(1.0 / (1.0 - p)), 0.0)

    # ---- matmul 2, accumulated across d_ff tiles ----------------------------
    acc_ref[...] += jnp.dot(h.astype(x_ref.dtype), w2_ref[...],
                            preferred_element_type=jnp.float32,
                            precision=jax.lax.Precision.HIGHEST)

    @pl.when(j == pl.num_programs(1) - 1)
    def _():
        o_ref[...] = (acc_ref[...] + b2_ref[...].astype(jnp.float32)).astype(o_ref.dtype)


def _round_up(a, b):
    return (a + b - 1) // b * b


def _pick_tile_f(d_ff):
    for t in (512, 256, 128):
        if d_ff % t == 0:
            return t
    return d_ff            # small / unaligned d_ff: take it whole (block == full dim)


def feed_forward_block(x, w1, b1, w2, b2, *, dropout_p, seed=0, training=True,
                       tile_m=None, tile_f=None):
    """y = dropout(relu(x @ w1 + b1)) @ w2 + b2  (PyTorch FeedForwardBlock.forward).

    x: (..., d_model); w1: (d_model, d_ff); b1: (d_ff,); w2: (d_ff, d_model); b2: (d_model,).
    """
    orig_shape = x.shape
    d_model = orig_shape[-1]
    d_ff = w1.shape[1]
    M = int(math.prod(orig_shape[:-1]))
    x2 = x.reshape(M, d_model)

    if tile_m is None:
        tile_m = min(512, _round_up(M, 8))     # big row tiles amortize grid-step overhead
    if tile_f is None:
        tile_f = _pick_tile_f(d_ff)

    m_pad = _round_up(M, tile_m)
    f_pad = _round_up(d_ff, tile_f)

    if m_pad != M:
        x2 = jnp.pad(x2, ((0, m_pad - M), (0, 0)))
    w1p = jnp.pad(w1, ((0, 0), (0, f_pad - d_ff))) if f_pad != d_ff else w1
    b1p = (jnp.pad(b1, (0, f_pad - d_ff)) if f_pad != d_ff else b1).reshape(1, f_pad)
    w2p = jnp.pad(w2, ((0, f_pad - d_ff), (0, 0))) if f_pad != d_ff else w2
    b2p = b2.reshape(1, d_model)

    p_eff = float(dropout_p) if training else 0.0      # nn.Dropout is identity in eval
    seed_arr = jnp.asarray([seed], dtype=jnp.int32)

    grid = (m_pad // tile_m, f_pad // tile_f)

    out = pl.pallas_call(
        functools.partial(_ffn_kernel, p=p_eff, tile_m=tile_m, tile_f=tile_f,
                          n_ff_total=f_pad),
        out_shape=jax.ShapeDtypeStruct((m_pad, d_model), x.dtype),
        grid=grid,
        in_specs=[
            pl.BlockSpec(memory_space=pltpu.MemorySpace.SMEM),        # seed scalar
            pl.BlockSpec((tile_m, d_model), lambda i, j: (i, 0)),     # x row tile
            pl.BlockSpec((d_model, tile_f), lambda i, j: (0, j)),     # W1 column tile
            pl.BlockSpec((1, tile_f),       lambda i, j: (0, j)),     # b1 tile
            pl.BlockSpec((tile_f, d_model), lambda i, j: (j, 0)),     # W2 row tile
            pl.BlockSpec((1, d_model),      lambda i, j: (0, 0)),     # b2
        ],
        out_specs=pl.BlockSpec((tile_m, d_model), lambda i, j: (i, 0)),
        scratch_shapes=[pltpu.VMEM((tile_m, d_model), jnp.float32)],  # f32 accumulator
        compiler_params=pltpu.CompilerParams(
            dimension_semantics=("parallel", "arbitrary"),
            vmem_limit_bytes=64 * 1024 * 1024,
        ),
    )(seed_arr, x2, w1p, b1p, w2p, b2p)

    return out[:M].reshape(orig_shape)


if __name__ == "__main__":
    B, S, d_model, d_ff = 2, 8, 128, 256
    dropout_p = 0.1

    key = jax.random.PRNGKey(0)
    kx, kw1, kb1, kw2, kb2 = jax.random.split(key, 5)

    x = jax.random.normal(kx, (B, S, d_model), dtype=jnp.float32)
    w1 = jax.random.normal(kw1, (d_model, d_ff), jnp.float32) * (1.0 / d_model ** 0.5)
    b1 = jax.random.normal(kb1, (d_ff,), jnp.float32) * 0.01
    w2 = jax.random.normal(kw2, (d_ff, d_model), jnp.float32) * (1.0 / d_ff ** 0.5)
    b2 = jax.random.normal(kb2, (d_model,), jnp.float32) * 0.01

    # Training mode (dropout active).  Small tiles force a 2x2 grid so the demo
    # exercises both the row tiling and the d_ff accumulation path.
    out_train = feed_forward_block(x, w1, b1, w2, b2, dropout_p=dropout_p,
                                   seed=1234, training=True, tile_m=8, tile_f=128)
    jax.block_until_ready(out_train)
    assert out_train.shape == x.shape and out_train.dtype == x.dtype
    assert bool(jnp.all(jnp.isfinite(out_train)))

    # Eval mode (dropout = identity) must match a pure-JAX reference.
    out_eval = feed_forward_block(x, w1, b1, w2, b2, dropout_p=dropout_p,
                                  training=False, tile_m=8, tile_f=128)
    jax.block_until_ready(out_eval)

    hp = jax.lax.Precision.HIGHEST
    x_flat = x.reshape(-1, d_model)
    ref = jnp.dot(jnp.maximum(jnp.dot(x_flat, w1, precision=hp) + b1, 0.0), w2,
                  precision=hp) + b2
    ref = ref.reshape(B, S, d_model)
    assert jnp.allclose(out_eval, ref, atol=1e-4, rtol=1e-4)

    # dropout_p = 0 in training mode must equal eval mode exactly (mask path skipped).
    out_p0 = feed_forward_block(x, w1, b1, w2, b2, dropout_p=0.0,
                                training=True, tile_m=8, tile_f=128)
    assert jnp.array_equal(out_p0, out_eval)

    # Auto tile selection (single larger tile) smoke test.
    out_auto = feed_forward_block(x, w1, b1, w2, b2, dropout_p=dropout_p,
                                  training=False)
    assert jnp.allclose(out_auto, ref, atol=1e-4, rtol=1e-4)

    print("KERNEL_OK")
</pallas_src>

<mosaic_0001>
module attributes {stable_mosaic.version = 11 : i64} {
  func.func @_ffn_kernel(%arg0: i32, %arg1: i32, %arg2: memref<1xi32, #tpu.memory_space<smem>>, %arg3: memref<8x128xf32, #tpu.memory_space<vmem>>, %arg4: memref<128x128xf32, #tpu.memory_space<vmem>>, %arg5: memref<1x128xf32, #tpu.memory_space<vmem>>, %arg6: memref<128x128xf32, #tpu.memory_space<vmem>>, %arg7: memref<1x128xf32, #tpu.memory_space<vmem>>, %arg8: memref<8x128xf32, #tpu.memory_space<vmem>>, %arg9: memref<8x128xf32, #tpu.memory_space<vmem>>) attributes {dimension_semantics = [#tpu.dimension_semantics<parallel>, #tpu.dimension_semantics<arbitrary>], iteration_bounds = array<i64: 2, 2>, scalar_prefetch = 0 : i64, scratch_operands = 1 : i64, tpu.core_type = #tpu.core_type<tc>, window_params = [{transform_indices = @transform_0, window_bounds = array<i64: 1>}, {transform_indices = @transform_1, window_bounds = array<i64: 8, 128>}, {transform_indices = @transform_2, window_bounds = array<i64: 128, 128>}, {transform_indices = @transform_3, window_bounds = array<i64: 1, 128>}, {transform_indices = @transform_4, window_bounds = array<i64: 128, 128>}, {pipeline_mode = #tpu.pipeline_mode<synchronous>, transform_indices = @transform_5, window_bounds = array<i64: 1, 128>}, {transform_indices = @transform_6, window_bounds = array<i64: 8, 128>}]} {
    %c0_i32 = arith.constant 0 : i32
    %0 = arith.cmpi eq, %arg1, %c0_i32 : i32
    %1 = arith.extui %0 : i1 to i32
    %c0_i32_0 = arith.constant 0 : i32
    %2 = arith.cmpi ne, %1, %c0_i32_0 : i32
    scf.if %2 {
      %cst_24 = arith.constant 0.000000e+00 : f32
      %68 = vector.broadcast %cst_24 : f32 to vector<8x128xf32>
      %c0_25 = arith.constant 0 : index
      %c0_26 = arith.constant 0 : index
      %69 = vector.load %arg9[%c0_25, %c0_26] : memref<8x128xf32, #tpu.memory_space<vmem>>, vector<8x128xf32>
      tpu.vector_store %arg9[%c0_25, %c0_26], %68 {strides = array<i32>} : memref<8x128xf32, #tpu.memory_space<vmem>>, vector<8x128xf32>,
    } else {
    }
    %c0 = arith.constant 0 : index
    %c0_1 = arith.constant 0 : index
    %3 = vector.load %arg3[%c0, %c0_1] : memref<8x128xf32, #tpu.memory_space<vmem>>, vector<8x128xf32>
    %c0_2 = arith.constant 0 : index
    %c0_3 = arith.constant 0 : index
    %4 = vector.load %arg4[%c0_2, %c0_3] : memref<128x128xf32, #tpu.memory_space<vmem>>, vector<128x128xf32>
    %cst = arith.constant dense<0.000000e+00> : vector<8x128xf32>
    %5 = tpu.matmul %3, %4, %cst {dimension_numbers = #tpu.dot_dimension_numbers<[1], [0], [0], [1], [0, 0, 1, 1], [], []>, precision = #tpu.contract_precision<fp32>} : vector<8x128xf32>, vector<128x128xf32>, vector<8x128xf32> -> vector<8x128xf32>
    %c0_4 = arith.constant 0 : index
    %c0_5 = arith.constant 0 : index
    %6 = vector.load %arg5[%c0_4, %c0_5] : memref<1x128xf32, #tpu.memory_space<vmem>>, vector<1x128xf32>
    %7 = vector.broadcast %6 : vector<1x128xf32> to vector<8x128xf32>
    %8 = arith.addf %5, %7 : vector<8x128xf32>
    %cst_6 = arith.constant 0.000000e+00 : f32
    %9 = vector.broadcast %cst_6 : f32 to vector<8x128xf32>
    %10 = arith.maximumf %8, %9 : vector<8x128xf32>
    %c0_7 = arith.constant 0 : index
    %11 = memref.load %arg2[%c0_7] : memref<1xi32, #tpu.memory_space<smem>>
    %c8_i32 = arith.constant 8 : i32
    %12 = arith.muli %arg0, %c8_i32 : i32
    %c128_i32 = arith.constant 128 : i32
    %13 = arith.muli %arg1, %c128_i32 : i32
    %14 = tpu.iota {dimensions = array<i32: 0>} : vector<8x128xi32>
    %15 = vector.broadcast %12 : i32 to vector<8x128xi32>
    %16 = arith.addi %14, %15 : vector<8x128xi32>
    %17 = tpu.iota {dimensions = array<i32: 1>} : vector<8x128xi32>
    %18 = vector.broadcast %13 : i32 to vector<8x128xi32>
    %19 = arith.addi %17, %18 : vector<8x128xi32>
    %c256_i32 = arith.constant 256 : i32
    %20 = vector.broadcast %c256_i32 : i32 to vector<8x128xi32>
    %21 = arith.muli %16, %20 : vector<8x128xi32>
    %22 = arith.addi %21, %19 : vector<8x128xi32>
    %c-1640531527_i32 = arith.constant -1640531527 : i32
    %23 = arith.muli %11, %c-1640531527_i32 : i32
    %24 = vector.broadcast %23 : i32 to vector<8x128xi32>
    %25 = arith.addi %22, %24 : vector<8x128xi32>
    %c16_i32 = arith.constant 16 : i32
    %26 = vector.broadcast %c16_i32 : i32 to vector<8x128xi32>
    %27 = arith.shrui %25, %26 : vector<8x128xi32>
    %28 = arith.xori %25, %27 : vector<8x128xi32>
    %c-2048144789_i32 = arith.constant -2048144789 : i32
    %29 = vector.broadcast %c-2048144789_i32 : i32 to vector<8x128xi32>
    %30 = arith.muli %28, %29 : vector<8x128xi32>
    %c13_i32 = arith.constant 13 : i32
    %31 = vector.broadcast %c13_i32 : i32 to vector<8x128xi32>
    %32 = arith.shrui %30, %31 : vector<8x128xi32>
    %33 = arith.xori %30, %32 : vector<8x128xi32>
    %c-1028477387_i32 = arith.constant -1028477387 : i32
    %34 = vector.broadcast %c-1028477387_i32 : i32 to vector<8x128xi32>
    %35 = arith.muli %33, %34 : vector<8x128xi32>
    %c16_i32_8 = arith.constant 16 : i32
    %36 = vector.broadcast %c16_i32_8 : i32 to vector<8x128xi32>
    %37 = arith.shrui %35, %36 : vector<8x128xi32>
    %38 = arith.xori %35, %37 : vector<8x128xi32>
    %39 = vector.broadcast %11 : i32 to vector<8x128xi32>
    %40 = arith.xori %38, %39 : vector<8x128xi32>
    %c16_i32_9 = arith.constant 16 : i32
    %41 = vector.broadcast %c16_i32_9 : i32 to vector<8x128xi32>
    %42 = arith.shrui %40, %41 : vector<8x128xi32>
    %43 = arith.xori %40, %42 : vector<8x128xi32>
    %c-2048144789_i32_10 = arith.constant -2048144789 : i32
    %44 = vector.broadcast %c-2048144789_i32_10 : i32 to vector<8x128xi32>
    %45 = arith.muli %43, %44 : vector<8x128xi32>
    %c13_i32_11 = arith.constant 13 : i32
    %46 = vector.broadcast %c13_i32_11 : i32 to vector<8x128xi32>
    %47 = arith.shrui %45, %46 : vector<8x128xi32>
    %48 = arith.xori %45, %47 : vector<8x128xi32>
    %c-1028477387_i32_12 = arith.constant -1028477387 : i32
    %49 = vector.broadcast %c-1028477387_i32_12 : i32 to vector<8x128xi32>
    %50 = arith.muli %48, %49 : vector<8x128xi32>
    %c16_i32_13 = arith.constant 16 : i32
    %51 = vector.broadcast %c16_i32_13 : i32 to vector<8x128xi32>
    %52 = arith.shrui %50, %51 : vector<8x128xi32>
    %53 = arith.xori %50, %52 : vector<8x128xi32>
    %c429496730_i32 = arith.constant 429496730 : i32
    %54 = vector.broadcast %c429496730_i32 : i32 to vector<8x128xi32>
    %55 = arith.cmpi uge, %53, %54 : vector<8x128xi32>
    %cst_14 = arith.constant 1.11111116 : f32
    %56 = vector.broadcast %cst_14 : f32 to vector<8x128xf32>
    %57 = arith.mulf %10, %56 : vector<8x128xf32>
    %cst_15 = arith.constant 0.000000e+00 : f32
    %58 = vector.broadcast %cst_15 : f32 to vector<8x128xf32>
    %59 = arith.select %55, %57, %58 : vector<8x128xi1>, vector<8x128xf32>
    %c0_16 = arith.constant 0 : index
    %c0_17 = arith.constant 0 : index
    %60 = vector.load %arg9[%c0_16, %c0_17] : memref<8x128xf32, #tpu.memory_space<vmem>>, vector<8x128xf32>
    %c0_18 = arith.constant 0 : index
    %c0_19 = arith.constant 0 : index
    %61 = vector.load %arg6[%c0_18, %c0_19] : memref<128x128xf32, #tpu.memory_space<vmem>>, vector<128x128xf32>
    %cst_20 = arith.constant dense<0.000000e+00> : vector<8x128xf32>
    %62 = tpu.matmul %59, %61, %cst_20 {dimension_numbers = #tpu.dot_dimension_numbers<[1], [0], [0], [1], [0, 0, 1, 1], [], []>, precision = #tpu.contract_precision<fp32>} : vector<8x128xf32>, vector<128x128xf32>, vector<8x128xf32> -> vector<8x128xf32>
    %63 = arith.addf %60, %62 : vector<8x128xf32>
    %c0_21 = arith.constant 0 : index
    %c0_22 = arith.constant 0 : index
    %64 = vector.load %arg9[%c0_21, %c0_22] : memref<8x128xf32, #tpu.memory_space<vmem>>, vector<8x128xf32>
    tpu.vector_store %arg9[%c0_21, %c0_22], %63 {strides = array<i32>} : memref<8x128xf32, #tpu.memory_space<vmem>>, vector<8x128xf32>,
    %c1_i32 = arith.constant 1 : i32
    %65 = arith.cmpi eq, %arg1, %c1_i32 : i32
    %66 = arith.extui %65 : i1 to i32
    %c0_i32_23 = arith.constant 0 : i32
    %67 = arith.cmpi ne, %66, %c0_i32_23 : i32
    scf.if %67 {
      %c0_24 = arith.constant 0 : index
      %c0_25 = arith.constant 0 : index
      %68 = vector.load %arg9[%c0_24, %c0_25] : memref<8x128xf32, #tpu.memory_space<vmem>>, vector<8x128xf32>
      %c0_26 = arith.constant 0 : index
      %c0_27 = arith.constant 0 : index
      %69 = vector.load %arg7[%c0_26, %c0_27] : memref<1x128xf32, #tpu.memory_space<vmem>>, vector<1x128xf32>
      %70 = vector.broadcast %69 : vector<1x128xf32> to vector<8x128xf32>
      %71 = arith.addf %68, %70 : vector<8x128xf32>
      %c0_28 = arith.constant 0 : index
      %c0_29 = arith.constant 0 : index
      %72 = vector.load %arg8[%c0_28, %c0_29] : memref<8x128xf32, #tpu.memory_space<vmem>>, vector<8x128xf32>
      tpu.vector_store %arg8[%c0_28, %c0_29], %71 {strides = array<i32>} : memref<8x128xf32, #tpu.memory_space<vmem>>, vector<8x128xf32>,
    } else {
    }
    return
  }
  func.func @transform_0(%arg0: i32, %arg1: i32) -> i32 {
    %c0_i32 = arith.constant 0 : i32
    %c0_i32_0 = arith.constant 0 : i32
    return %c0_i32 : i32
  }
  func.func @transform_1(%arg0: i32, %arg1: i32) -> (i32, i32) {
    %c0_i32 = arith.constant 0 : i32
    %c0_i32_0 = arith.constant 0 : i32
    return %arg0, %c0_i32 : i32, i32
  }
  func.func @transform_2(%arg0: i32, %arg1: i32) -> (i32, i32) {
    %c0_i32 = arith.constant 0 : i32
    %c0_i32_0 = arith.constant 0 : i32
    return %c0_i32, %arg1 : i32, i32
  }
  func.func @transform_3(%arg0: i32, %arg1: i32) -> (i32, i32) {
    %c0_i32 = arith.constant 0 : i32
    %c0_i32_0 = arith.constant 0 : i32
    return %c0_i32, %arg1 : i32, i32
  }
  func.func @transform_4(%arg0: i32, %arg1: i32) -> (i32, i32) {
    %c0_i32 = arith.constant 0 : i32
    %c0_i32_0 = arith.constant 0 : i32
    return %arg1, %c0_i32 : i32, i32
  }
  func.func @transform_5(%arg0: i32, %arg1: i32) -> (i32, i32) {
    %c0_i32 = arith.constant 0 : i32
    %c0_i32_0 = arith.constant 0 : i32
    %c0_i32_1 = arith.constant 0 : i32
    return %c0_i32, %c0_i32_0 : i32, i32
  }
  func.func @transform_6(%arg0: i32, %arg1: i32) -> (i32, i32) {
    %c0_i32 = arith.constant 0 : i32
    %c0_i32_0 = arith.constant 0 : i32
    return %arg0, %c0_i32 : i32, i32
  }
}

</mosaic_0001>

<llo_original>
// kernel: tpu_custom_call.1
$region0: #{tpu_custom_call.1}
  #allocation0 [shape = 'u32[]', space=smem, size = 0x4, offset = 0x4, fixed_abs, tag = 'smem constant byte address 0x4 - core index']
  #allocation1 [shape = 'u32[144,128]{1,0:T(1,128)}', space=vmem, size = 0x12000, scoped, tag = 'internal scratch']
  #allocation2 [shape = 'f32[8,128]{1,0:T(8,128)}', space=vmem, size = 0x1000, scoped, tag = 'scratch operand']
  #allocation3 [shape = 's32[1]{0:T(128)S(6)}', space=smem, size = 0x200, scoped, tag = 'scoped memory for tpu_custom_call.1']
  %s0 = inlined_call_operand.<no memory space> [shape: s32[1], index: 0, kind: input, shape index: {}]
  %s1 = inlined_call_operand.hbm [shape: f32[16,128], index: 1, kind: input, shape index: {}]
  %s2 = inlined_call_operand.hbm [shape: f32[128,256], index: 2, kind: input, shape index: {}]
  %s3 = inlined_call_operand.hbm [shape: f32[1,256], index: 3, kind: input, shape index: {}]
  %s4 = inlined_call_operand.hbm [shape: f32[256,128], index: 4, kind: input, shape index: {}]
  %s5 = inlined_call_operand.hbm [shape: f32[1,128], index: 5, kind: input, shape index: {}]
  %s6 = inlined_call_operand.hbm [shape: f32[16,128], index: 6, kind: output, shape index: {}]
  %s7 = sld [smem:[#allocation0]]
  $region85: #{tpu_custom_call.1} parent=0
    _
  %s9 = ssub.s32 1, %s7
  %s10 = scalar_select 0, %s9, %s7
  %11 = sst [smem:[#allocation3]] %s0
  $region1: #{tpu_custom_call.1} parent=0
    #allocation4 [shape = 'u8[8192]{0}', space=vmem, size = 0x2000, scoped, tag = 'input window, operand 1']
    #allocation5 [shape = 's32[2]{0}', space=sflag, size = 0x8, scoped, tag = 'scoped memory for tpu_custom_call.1']
    #allocation6 [shape = 's32[2]{0}', space=sflag, size = 0x8, scoped, tag = 'scoped memory for tpu_custom_call.1']
    #allocation7 [shape = 'u8[131072]{0}', space=vmem, size = 0x20000, scoped, tag = 'input window, operand 2']
    #allocation8 [shape = 's32[2]{0}', space=sflag, size = 0x8, scoped, tag = 'scoped memory for tpu_custom_call.1']
    #allocation9 [shape = 'u8[1024]{0}', space=vmem, size = 0x400, scoped, tag = 'input window, operand 3']
    #allocation10 [shape = 'u8[131072]{0}', space=vmem, size = 0x20000, scoped, tag = 'input window, operand 4']
    #allocation11 [shape = 's32[2]{0}', space=sflag, size = 0x8, scoped, tag = 'scoped memory for tpu_custom_call.1']
    #allocation12 [shape = 'u8[512]{0}', space=vmem, size = 0x400, scoped, tag = 'input window, operand 5, single buffered']
    #allocation13 [shape = 'u8[8192]{0}', space=vmem, size = 0x2000, scoped, tag = 'output window, operand 0']
    %12 = vsyncpa [#allocation5], 0
    %s13 = scalar_lea.sflag [#allocation5], 1
    %14 = vsyncpa %s13, 0
    %15 = vsyncpa [#allocation8], 0
    %s16 = scalar_lea.sflag [#allocation8], 1
    %17 = vsyncpa %s16, 0
    %18 = vsyncpa [#allocation11], 0
    %s19 = scalar_lea.sflag [#allocation11], 1
    %20 = vsyncpa %s19, 0
    %21 = vsyncpa [#allocation6], 0
    %s22 = scalar_lea.sflag [#allocation6], 1
    %23 = vsyncpa %s22, 0
    loop: start=0, step=1, limit=6
    $region2: #{tpu_custom_call.1} parent=1 // loop_pre_header
      _
    $region3: #{tpu_custom_call.1} parent=1 // loop_header
      %s25 = sphi 0, %s29
      %p26 = scmp.ge.s32.totalorder %s25, 6
      %s32 = sphi 0, %s44
      %s33 = sphi 0, %s40
      %s34 = sphi 0, %s32
      %s35 = sphi 0, %s33
      %s36 = sphi 0, %s34
      %s37 = sphi 0, %s35
      %s45 = sphi 0, %s45
      %s47 = sphi 0, %s45
      %s48 = sphi 0, %s47
      %s62 = sphi 0, %s48
      %s68 = sphi 0, %s70
      %s71 = sphi 0, %s68
      %s72 = sphi 0, %s71
      %s88 = sphi 0, %s72
      %s94 = sphi 0, %s96
      %s97 = sphi 0, %s94
      %s98 = sphi 0, %s97
      %s114 = sphi 0, %s98
      %s120 = sphi 0, %s122
      %s123 = sphi 0, %s120
      %s124 = sphi 0, %s123
      %s140 = sphi 0, %s124
      %s146 = sphi 0, %s148
      %s149 = sphi 0, %s146
      %s150 = sphi 0, %s149
      %s166 = sphi 0, %s150
      %s170 = sphi 0, %s170
      %s172 = sphi 0, %s170
      %s173 = sphi 0, %s172
      %s187 = sphi 0, %s173
      %s193 = sphi 0, %s195
      %s196 = sphi 0, %s193
      %s197 = sphi 0, %s196
      %s213 = sphi 0, %s197
    $region4: #{tpu_custom_call.1} parent=1 // loop_header_branch
      %28 = sbr.rel (%p26) target = $region8
    $region5: #{tpu_custom_call.1} parent=1 // loop_body
      %s30 = ssub.s32 %s25, 1
      %s31 = ssub.s32 %s25, 2
      %s38 = sadd.s32 1, %s33
      %p39 = scmp.ge.s32.totalorder %s38, 2
      %s40 = scalar_select %p39, 0, %s38
      %s41 = sadd.s32 1, %s32
      %s42 = scalar_select %p39, %s41, %s32
      %p43 = scmp.ge.s32.totalorder %s42, 2
      %s44 = scalar_select %p43, 0, %s42
      %s46 = sadd.s32 %s45, 1
      %p49 = scmp.eq.s32.totalorder %s25, 3
      %p50 = scmp.ne.s32.totalorder %s45, %s47
      %p51 = scmp.eq.s32.totalorder %s25, 0
      %p52 = por %p50, %p51
      %p53 = scmp.ne.s32.totalorder %s45, %s47
      %p54 = scmp.eq.s32.totalorder %s30, 3
      %p55 = por %p53, %p54
      %p56 = scmp.ne.s32.totalorder %s47, %s48
      %p57 = scmp.eq.s32.totalorder %s30, 0
      %p58 = por %p56, %p57
      %p59 = scmp.ne.s32.totalorder %s47, %s48
      %p60 = scmp.eq.s32.totalorder %s31, 3
      %p61 = por %p59, %p60
      %p63 = scmp.ne.s32.totalorder %s48, %s62
      %p64 = scmp.eq.s32.totalorder %s31, 0
      %p65 = por %p63, %p64
      %s66 = ssub.s32 %s32, %s44
      %p67 = scmp.eq.s32.totalorder %s66, 0
      %s69 = sadd.s32 %s68, 1
      %s70 = scalar_select %p67, %s68, %s69
      %p73 = pneg %p67
      %p74 = scmp.eq.s32.totalorder %s25, 3
      %p75 = por %p73, %p74
      %p76 = scmp.ne.s32.totalorder %s68, %s71
      %p77 = scmp.eq.s32.totalorder %s25, 0
      %p78 = por %p76, %p77
      %p79 = scmp.ne.s32.totalorder %s68, %s71
      %p80 = scmp.eq.s32.totalorder %s30, 3
      %p81 = por %p79, %p80
      %p82 = scmp.ne.s32.totalorder %s71, %s72
      %p83 = scmp.eq.s32.totalorder %s30, 0
      %p84 = por %p82, %p83
      %p85 = scmp.ne.s32.totalorder %s71, %s72
      %p86 = scmp.eq.s32.totalorder %s31, 3
      %p87 = por %p85, %p86
      %p89 = scmp.ne.s32.totalorder %s72, %s88
      %p90 = scmp.eq.s32.totalorder %s31, 0
      %p91 = por %p89, %p90
      %s92 = ssub.s32 %s33, %s40
      %p93 = scmp.eq.s32.totalorder %s92, 0
      %s95 = sadd.s32 %s94, 1
      %s96 = scalar_select %p93, %s94, %s95
      %p99 = pneg %p93
      %p100 = scmp.eq.s32.totalorder %s25, 3
      %p101 = por %p99, %p100
      %p102 = scmp.ne.s32.totalorder %s94, %s97
      %p103 = scmp.eq.s32.totalorder %s25, 0
      %p104 = por %p102, %p103
      %p105 = scmp.ne.s32.totalorder %s94, %s97
      %p106 = scmp.eq.s32.totalorder %s30, 3
      %p107 = por %p105, %p106
      %p108 = scmp.ne.s32.totalorder %s97, %s98
      %p109 = scmp.eq.s32.totalorder %s30, 0
      %p110 = por %p108, %p109
      %p111 = scmp.ne.s32.totalorder %s97, %s98
      %p112 = scmp.eq.s32.totalorder %s31, 3
      %p113 = por %p111, %p112
      %p115 = scmp.ne.s32.totalorder %s98, %s114
      %p116 = scmp.eq.s32.totalorder %s31, 0
      %p117 = por %p115, %p116
      %s118 = ssub.s32 %s33, %s40
      %p119 = scmp.eq.s32.totalorder %s118, 0
      %s121 = sadd.s32 %s120, 1
      %s122 = scalar_select %p119, %s120, %s121
      %p125 = pneg %p119
      %p126 = scmp.eq.s32.totalorder %s25, 3
      %p127 = por %p125, %p126
      %p128 = scmp.ne.s32.totalorder %s120, %s123
      %p129 = scmp.eq.s32.totalorder %s25, 0
      %p130 = por %p128, %p129
      %p131 = scmp.ne.s32.totalorder %s120, %s123
      %p132 = scmp.eq.s32.totalorder %s30, 3
      %p133 = por %p131, %p132
      %p134 = scmp.ne.s32.totalorder %s123, %s124
      %p135 = scmp.eq.s32.totalorder %s30, 0
      %p136 = por %p134, %p135
      %p137 = scmp.ne.s32.totalorder %s123, %s124
      %p138 = scmp.eq.s32.totalorder %s31, 3
      %p139 = por %p137, %p138
      %p141 = scmp.ne.s32.totalorder %s124, %s140
      %p142 = scmp.eq.s32.totalorder %s31, 0
      %p143 = por %p141, %p142
      %s144 = ssub.s32 %s33, %s40
      %p145 = scmp.eq.s32.totalorder %s144, 0
      %s147 = sadd.s32 %s146, 1
      %s148 = scalar_select %p145, %s146, %s147
      %p151 = pneg %p145
      %p152 = scmp.eq.s32.totalorder %s25, 3
      %p153 = por %p151, %p152
      %p154 = scmp.ne.s32.totalorder %s146, %s149
      %p155 = scmp.eq.s32.totalorder %s25, 0
      %p156 = por %p154, %p155
      %p157 = scmp.ne.s32.totalorder %s146, %s149
      %p158 = scmp.eq.s32.totalorder %s30, 3
      %p159 = por %p157, %p158
      %p160 = scmp.ne.s32.totalorder %s149, %s150
      %p161 = scmp.eq.s32.totalorder %s30, 0
      %p162 = por %p160, %p161
      %p163 = scmp.ne.s32.totalorder %s149, %s150
      %p164 = scmp.eq.s32.totalorder %s31, 3
      %p165 = por %p163, %p164
      %p167 = scmp.ne.s32.totalorder %s150, %s166
      %p168 = scmp.eq.s32.totalorder %s31, 0
      %p169 = por %p167, %p168
      %s171 = sadd.s32 %s170, 1
      %p174 = scmp.eq.s32.totalorder %s25, 3
      %p175 = scmp.ne.s32.totalorder %s170, %s172
      %p176 = scmp.eq.s32.totalorder %s25, 0
      %p177 = por %p175, %p176
      %p178 = scmp.ne.s32.totalorder %s170, %s172
      %p179 = scmp.eq.s32.totalorder %s30, 3
      %p180 = por %p178, %p179
      %p181 = scmp.ne.s32.totalorder %s172, %s173
      %p182 = scmp.eq.s32.totalorder %s30, 0
      %p183 = por %p181, %p182
      %p184 = scmp.ne.s32.totalorder %s172, %s173
      %p185 = scmp.eq.s32.totalorder %s31, 3
      %p186 = por %p184, %p185
      %p188 = scmp.ne.s32.totalorder %s173, %s187
      %p189 = scmp.eq.s32.totalorder %s31, 0
      %p190 = por %p188, %p189
      %s191 = ssub.s32 %s32, %s44
      %p192 = scmp.eq.s32.totalorder %s191, 0
      %s194 = sadd.s32 %s193, 1
      %s195 = scalar_select %p192, %s193, %s194
      %p198 = pneg %p192
      %p199 = scmp.eq.s32.totalorder %s25, 3
      %p200 = por %p198, %p199
      %p201 = scmp.ne.s32.totalorder %s193, %s196
      %p202 = scmp.eq.s32.totalorder %s25, 0
      %p203 = por %p201, %p202
      %p204 = scmp.ne.s32.totalorder %s193, %s196
      %p205 = scmp.eq.s32.totalorder %s30, 3
      %p206 = por %p204, %p205
      %p207 = scmp.ne.s32.totalorder %s196, %s197
      %p208 = scmp.eq.s32.totalorder %s30, 0
      %p209 = por %p207, %p208
      %p210 = scmp.ne.s32.totalorder %s196, %s197
      %p211 = scmp.eq.s32.totalorder %s31, 3
      %p212 = por %p210, %p211
      %p214 = scmp.ne.s32.totalorder %s197, %s213
      %p215 = scmp.eq.s32.totalorder %s31, 0
      %p216 = por %p214, %p215
      %p217 = scmp.le.s32.totalorder 1, %s25
      %p218 = scmp.lt.s32.totalorder %s25, 5
      %p219 = pnand %p217, %p218
      %p220 = pneg %p219
      // Predicated region
      $region9: #{tpu_custom_call.1} parent=5 // pred_check
        _
      $region10: #{tpu_custom_call.1} parent=5 // pred_check_branch
        %222 = sbr.rel (%p219) target = $region12
      $region11: #{tpu_custom_call.1} parent=5 // pred_region
        %s223 = ssub.s32 %s25, 1
        // Predicated region
        $region13: #{tpu_custom_call.1} parent=11 // pred_check
          %p224 = pneg %p58
        $region14: #{tpu_custom_call.1} parent=11 // pred_check_branch
          %226 = sbr.rel (%p224) target = $region16
        $region15: #{tpu_custom_call.1} parent=11 // pred_region
          _
        $region16: #{tpu_custom_call.1} parent=11 // pred_fallthru
          _
        // Predicated region
        $region17: #{tpu_custom_call.1} parent=11 // pred_check
          %p227 = pneg %p183
        $region18: #{tpu_custom_call.1} parent=11 // pred_check_branch
          %229 = sbr.rel (%p227) target = $region20
        $region19: #{tpu_custom_call.1} parent=11 // pred_region
          %s231 = ssub.s32 16, 16
          %232 = vsyncadd [#allocation11], %s231
          %s234 = sshll.u32 [#allocation12], 4
          %s235 = int_to_ptr.vmem [resolvable:$true] %s234
          %237 = dma.hbm_to_vmem [thread:$0]  %s5, 16, %s235, [#allocation11]
        $region20: #{tpu_custom_call.1} parent=11 // pred_fallthru
          _
      $region12: #{tpu_custom_call.1} parent=5 // pred_fallthru
        _
      %p238 = scmp.lt.s32.totalorder %s25, 4
      // Predicated region
      $region21: #{tpu_custom_call.1} parent=5 // pred_check
        %p239 = pneg %p238
      $region22: #{tpu_custom_call.1} parent=5 // pred_check_branch
        %241 = sbr.rel (%p239) target = $region24
      $region23: #{tpu_custom_call.1} parent=5 // pred_region
        // Predicated region
        $region25: #{tpu_custom_call.1} parent=23 // pred_check
          %p242 = pneg %p78
        $region26: #{tpu_custom_call.1} parent=23 // pred_check_branch
          %244 = sbr.rel (%p242) target = $region28
        $region27: #{tpu_custom_call.1} parent=23 // pred_region
          %s245 = sand.u32 %s68, 1
          %s246 = scalar_lea.sflag [#allocation5], %s245
          %s247 = sand.u32 %s68, 1
          %s248 = smul.addr %s247, 8
          %s249 = scalar_lea.vmem [#allocation4], %s248
          %s251 = ssub.s32 128, 128
          %252 = vsyncadd %s246, %s251
          %s253 = smul.addr %s32, 128
          %s254 = scalar_lea.hbm %s1, %s253
          %s256 = sshll.u32 %s249, 4
          %s257 = int_to_ptr.vmem [resolvable:$true] %s256
          %259 = dma.hbm_to_vmem [thread:$0]  %s254, 128, %s257, %s246
        $region28: #{tpu_custom_call.1} parent=23 // pred_fallthru
          _
        // Predicated region
        $region29: #{tpu_custom_call.1} parent=23 // pred_check
          %p260 = pneg %p104
        $region30: #{tpu_custom_call.1} parent=23 // pred_check_branch
          %262 = sbr.rel (%p260) target = $region32
        $region31: #{tpu_custom_call.1} parent=23 // pred_region
          %s263 = sand.u32 %s25, 1
          %s264 = scalar_lea.sflag [#allocation8], %s263
          %s265 = sand.u32 %s94, 1
          %s266 = smul.addr %s265, 128
          %s267 = scalar_lea.vmem [#allocation7], %s266
          %s269 = ssub.s32 2048, 2048
          %270 = vsyncadd %s264, %s269
          %s271 = smul.addr %s33, 128
          %s272 = scalar_lea.hbm %s2, %s271
          %s273 = sshll.u32 %s267, 4
          %s274 = int_to_ptr.vmem [resolvable:$true] %s273
          %279 = dma.hbm_to_vmem [thread:$0]  %s272, 2048, %s274, %s264, 256, 128, 8
        $region32: #{tpu_custom_call.1} parent=23 // pred_fallthru
          _
        // Predicated region
        $region33: #{tpu_custom_call.1} parent=23 // pred_check
          %p280 = pneg %p130
        $region34: #{tpu_custom_call.1} parent=23 // pred_check_branch
          %282 = sbr.rel (%p280) target = $region36
        $region35: #{tpu_custom_call.1} parent=23 // pred_region
          %s283 = sand.u32 %s25, 1
          %s284 = scalar_lea.sflag [#allocation8], %s283
          %s285 = sand.u32 %s120, 1
          %s286 = scalar_lea.vmem [#allocation9], %s285
          %s288 = ssub.s32 16, 16
          %289 = vsyncadd %s284, %s288
          %s290 = smul.addr %s33, 16
          %s291 = scalar_lea.hbm %s3, %s290
          %s293 = sshll.u32 %s286, 4
          %s294 = int_to_ptr.vmem [resolvable:$true] %s293
          %296 = dma.hbm_to_vmem [thread:$0]  %s291, 16, %s294, %s284
        $region36: #{tpu_custom_call.1} parent=23 // pred_fallthru
          _
        // Predicated region
        $region37: #{tpu_custom_call.1} parent=23 // pred_check
          %p297 = pneg %p156
        $region38: #{tpu_custom_call.1} parent=23 // pred_check_branch
          %299 = sbr.rel (%p297) target = $region40
        $region39: #{tpu_custom_call.1} parent=23 // pred_region
          %s300 = sand.u32 %s25, 1
          %s301 = scalar_lea.sflag [#allocation11], %s300
          %s302 = sand.u32 %s146, 1
          %s303 = smul.addr %s302, 128
          %s304 = scalar_lea.vmem [#allocation10], %s303
          %s305 = smul.u32 16, %s33
          %s307 = ssub.s32 2048, 2048
          %308 = vsyncadd %s301, %s307
          %s309 = smul.addr %s305, 128
          %s310 = scalar_lea.hbm %s4, %s309
          %s311 = sshll.u32 %s304, 4
          %s312 = int_to_ptr.vmem [resolvable:$true] %s311
          %317 = dma.hbm_to_vmem [thread:$0]  %s310, 2048, %s312, %s301, 128, 128, 8
        $region40: #{tpu_custom_call.1} parent=23 // pred_fallthru
          _
      $region24: #{tpu_custom_call.1} parent=5 // pred_fallthru
        _
      %p318 = scmp.le.s32.totalorder 1, %s25
      %p319 = scmp.lt.s32.totalorder %s25, 5
      %p320 = pnand %p318, %p319
      %p321 = pneg %p320
      // Predicated region
      $region41: #{tpu_custom_call.1} parent=5 // pred_check
        _
      $region42: #{tpu_custom_call.1} parent=5 // pred_check_branch
        %323 = sbr.rel (%p320) target = $region44
      $region43: #{tpu_custom_call.1} parent=5 // pred_region
        %s324 = ssub.s32 %s25, 1
        %s325 = sand.u32 %s71, 1
        %s326 = scalar_lea.sflag [#allocation5], %s325
        %s327 = sand.u32 %s71, 1
        %s328 = smul.addr %s327, 8
        %s329 = scalar_lea.vmem [#allocation4], %s328
        // Predicated region
        $region45: #{tpu_custom_call.1} parent=43 // pred_check
          %p330 = pneg %p84
        $region46: #{tpu_custom_call.1} parent=43 // pred_check_branch
          %332 = sbr.rel (%p330) target = $region48
        $region47: #{tpu_custom_call.1} parent=43 // pred_region
          %333 = dma.done %s326, 128
        $region48: #{tpu_custom_call.1} parent=43 // pred_fallthru
          _
        %s334 = sand.u32 %s30, 1
        %s335 = scalar_lea.sflag [#allocation8], %s334
        %s336 = sand.u32 %s97, 1
        %s337 = smul.addr %s336, 128
        %s338 = scalar_lea.vmem [#allocation7], %s337
        // Predicated region
        $region49: #{tpu_custom_call.1} parent=43 // pred_check
          %p339 = pneg %p110
        $region50: #{tpu_custom_call.1} parent=43 // pred_check_branch
          %341 = sbr.rel (%p339) target = $region52
        $region51: #{tpu_custom_call.1} parent=43 // pred_region
          %342 = dma.done %s335, 2048
        $region52: #{tpu_custom_call.1} parent=43 // pred_fallthru
          _
        %s343 = sand.u32 %s30, 1
        %s344 = scalar_lea.sflag [#allocation8], %s343
        %s345 = sand.u32 %s123, 1
        %s346 = scalar_lea.vmem [#allocation9], %s345
        // Predicated region
        $region53: #{tpu_custom_call.1} parent=43 // pred_check
          %p347 = pneg %p136
        $region54: #{tpu_custom_call.1} parent=43 // pred_check_branch
          %349 = sbr.rel (%p347) target = $region56
        $region55: #{tpu_custom_call.1} parent=43 // pred_region
          %350 = dma.done %s344, 16
        $region56: #{tpu_custom_call.1} parent=43 // pred_fallthru
          _
        %s351 = sand.u32 %s30, 1
        %s352 = scalar_lea.sflag [#allocation11], %s351
        %s353 = sand.u32 %s149, 1
        %s354 = smul.addr %s353, 128
        %s355 = scalar_lea.vmem [#allocation10], %s354
        // Predicated region
        $region57: #{tpu_custom_call.1} parent=43 // pred_check
          %p356 = pneg %p162
        $region58: #{tpu_custom_call.1} parent=43 // pred_check_branch
          %358 = sbr.rel (%p356) target = $region60
        $region59: #{tpu_custom_call.1} parent=43 // pred_region
          %359 = dma.done %s352, 2048
        $region60: #{tpu_custom_call.1} parent=43 // pred_fallthru
          _
        // Predicated region
        $region61: #{tpu_custom_call.1} parent=43 // pred_check
          %p360 = pneg %p183
        $region62: #{tpu_custom_call.1} parent=43 // pred_check_branch
          %362 = sbr.rel (%p360) target = $region64
        $region63: #{tpu_custom_call.1} parent=43 // pred_region
          %363 = dma.done [#allocation11], 16
        $region64: #{tpu_custom_call.1} parent=43 // pred_fallthru
          _
        %p364 = pneg %p58
        %p365 = pneg %p55
        %s366 = sand.u32 %s71, 1
        %s367 = scalar_lea.sflag [#allocation5], %s366
        %s368 = sand.u32 %s71, 1
        %s369 = smul.addr %s368, 8
        %s370 = scalar_lea.vmem [#allocation4], %s369
        %p371 = pneg %p84
        %p372 = pneg %p81
        %s373 = sand.u32 %s30, 1
        %s374 = scalar_lea.sflag [#allocation8], %s373
        %s375 = sand.u32 %s97, 1
        %s376 = smul.addr %s375, 128
        %s377 = scalar_lea.vmem [#allocation7], %s376
        %p378 = pneg %p110
        %p379 = pneg %p107
        %s380 = sand.u32 %s30, 1
        %s381 = scalar_lea.sflag [#allocation8], %s380
        %s382 = sand.u32 %s123, 1
        %s383 = scalar_lea.vmem [#allocation9], %s382
        %p384 = pneg %p136
        %p385 = pneg %p133
        %s386 = sand.u32 %s30, 1
        %s387 = scalar_lea.sflag [#allocation11], %s386
        %s388 = sand.u32 %s149, 1
        %s389 = smul.addr %s388, 128
        %s390 = scalar_lea.vmem [#allocation10], %s389
        %p391 = pneg %p162
        %p392 = pneg %p159
        %p393 = pneg %p183
        %p394 = pneg %p180
        %p395 = pneg %p209
        %p396 = pneg %p206
        %s397 = sand.u32 %s196, 1
        %s398 = scalar_lea.sflag [#allocation6], %s397
        %s399 = sand.u32 %s196, 1
        %s400 = smul.addr %s399, 8
        %s401 = scalar_lea.vmem [#allocation13], %s400
        %s402 = smul.u32 16, %s35
        %p403 = scmp.eq.s32.totalorder %s35, 0
        // Predicated region
        $region65: #{tpu_custom_call.1} parent=43 // pred_check
          %p404 = pneg %p403
        $region66: #{tpu_custom_call.1} parent=43 // pred_check_branch
          %406 = sbr.rel (%p404) target = $region68
        $region67: #{tpu_custom_call.1} parent=43 // pred_region
          %407 = vst [vmem:[#allocation2] sm:$0xff] 0.0
        $region68: #{tpu_custom_call.1} parent=43 // pred_fallthru
          _
        %v408 = vld [vmem:[%s329] sm:$0xff]
        %v409 = vld [vmem:[%s338] sm:$0xff]
        %v410 = vld [vmem:[%s338 + $0x8] sm:$0xff]
        %v411 = vld [vmem:[%s338 + $0x10] sm:$0xff]
        %v412 = vld [vmem:[%s338 + $0x18] sm:$0xff]
        %v413 = vld [vmem:[%s338 + $0x20] sm:$0xff]
        %v414 = vld [vmem:[%s338 + $0x28] sm:$0xff]
        %v415 = vld [vmem:[%s338 + $0x30] sm:$0xff]
        %v416 = vld [vmem:[%s338 + $0x38] sm:$0xff]
        %v417 = vld [vmem:[%s338 + $0x40] sm:$0xff]
        %v418 = vld [vmem:[%s338 + $0x48] sm:$0xff]
        %v419 = vld [vmem:[%s338 + $0x50] sm:$0xff]
        %v420 = vld [vmem:[%s338 + $0x58] sm:$0xff]
        %v421 = vld [vmem:[%s338 + $0x60] sm:$0xff]
        %v422 = vld [vmem:[%s338 + $0x68] sm:$0xff]
        %v423 = vld [vmem:[%s338 + $0x70] sm:$0xff]
        %v424 = vld [vmem:[%s338 + $0x78] sm:$0xff]
        %v425 = vld [vmem:[%s346] sm:$0x1]
        %v427 = vlaneseq
        %v428 = vshrl.u32 %v427, 7
        %v429 = vsub.s32 0, %v428
        %v430 = vrot.slane %v425, %v429
        %432 = vmatprep.subr.mxu0 0.0
        %v433 = vand.u32 %v409, 4294901760
        %434 = vmatpush1.msra.mxu0 %v433
        %435 = vmatprep.subr.mxu0 0.0
        %v436 = vand.u32 %v410, 4294901760
        %437 = vmatpush1.msra.mxu0 %v436
        %438 = vmatprep.subr.mxu0 0.0
        %v439 = vand.u32 %v411, 4294901760
        %440 = vmatpush1.msra.mxu0 %v439
        %441 = vmatprep.subr.mxu0 0.0
        %v442 = vand.u32 %v412, 4294901760
        %443 = vmatpush1.msra.mxu0 %v442
        %444 = vmatprep.subr.mxu0 0.0
        %v445 = vand.u32 %v413, 4294901760
        %446 = vmatpush1.msra.mxu0 %v445
        %447 = vmatprep.subr.mxu0 0.0
        %v448 = vand.u32 %v414, 4294901760
        %449 = vmatpush1.msra.mxu0 %v448
        %450 = vmatprep.subr.mxu0 0.0
        %v451 = vand.u32 %v415, 4294901760
        %452 = vmatpush1.msra.mxu0 %v451
        %453 = vmatprep.subr.mxu0 0.0
        %v454 = vand.u32 %v416, 4294901760
        %455 = vmatpush1.msra.mxu0 %v454
        %456 = vmatprep.subr.mxu0 0.0
        %v457 = vand.u32 %v417, 4294901760
        %458 = vmatpush1.msra.mxu0 %v457
        %459 = vmatprep.subr.mxu0 0.0
        %v460 = vand.u32 %v418, 4294901760
        %461 = vmatpush1.msra.mxu0 %v460
        %462 = vmatprep.subr.mxu0 0.0
        %v463 = vand.u32 %v419, 4294901760
        %464 = vmatpush1.msra.mxu0 %v463
        %465 = vmatprep.subr.mxu0 0.0
        %v466 = vand.u32 %v420, 4294901760
        %467 = vmatpush1.msra.mxu0 %v466
        %468 = vmatprep.subr.mxu0 0.0
        %v469 = vand.u32 %v421, 4294901760
        %470 = vmatpush1.msra.mxu0 %v469
        %471 = vmatprep.subr.mxu0 0.0
        %v472 = vand.u32 %v422, 4294901760
        %473 = vmatpush1.msra.mxu0 %v472
        %474 = vmatprep.subr.mxu0 0.0
        %v475 = vand.u32 %v423, 4294901760
        %476 = vmatpush1.msra.mxu0 %v475
        %477 = vmatprep.subr.mxu0 0.0
        %v478 = vand.u32 %v424, 4294901760
        %479 = vmatpush1.msra.mxu0 %v478
        %480 = vmatprep.subr.mxu0 0.0
        %481 = vmatpush1.msra.mxu0 0.0
        %482 = vmatprep.subr.mxu0 0.0
        %483 = vmatpush1.msra.mxu0 0.0
        %484 = vmatprep.subr.mxu0 0.0
        %485 = vmatpush1.msra.mxu0 0.0
        %486 = vmatprep.subr.mxu0 0.0
        %487 = vmatpush1.msra.mxu0 0.0
        %488 = vmatprep.subr.mxu0 0.0
        %489 = vmatpush1.msra.mxu0 0.0
        %490 = vmatprep.subr.mxu0 0.0
        %491 = vmatpush1.msra.mxu0 0.0
        %492 = vmatprep.subr.mxu0 0.0
        %493 = vmatpush1.msra.mxu0 0.0
        %494 = vmatprep.subr.mxu0 0.0
        %495 = vmatpush1.msra.mxu0 0.0
        %496 = vmatprep.subr.mxu0 0.0
        %497 = vmatpush1.msra.mxu0 0.0
        %498 = vmatprep.subr.mxu0 0.0
        %499 = vmatpush1.msra.mxu0 0.0
        %500 = vmatprep.subr.mxu0 0.0
        %501 = vmatpush1.msra.mxu0 0.0
        %502 = vmatprep.subr.mxu0 0.0
        %503 = vmatpush1.msra.mxu0 0.0
        %504 = vmatprep.subr.mxu0 0.0
        %505 = vmatpush1.msra.mxu0 0.0
        %506 = vmatprep.subr.mxu0 0.0
        %507 = vmatpush1.msra.mxu0 0.0
        %508 = vmatprep.subr.mxu0 0.0
        %509 = vmatpush1.msra.mxu0 0.0
        %510 = vmatprep.subr.mxu0 0.0
        %511 = vmatpush1.msra.mxu0 0.0
        %512 = vmatprep.mubr.f32.mxu0 0.0
        %v513 = vand.u32 %v408, 4294901760
        %v514 = vsub.f32 %v408, %v513
        %v515 = vand.u32 %v514, 4294901760
        %v516 = vsub.f32 %v514, %v515
        %v517 = vand.u32 %v516, 4294901760
        %518 = vmatmul.mubr.f32.gmra.mrb[0].mxu0 %v517
        %v519 = vpop.f32.mrb[0].mxu0
        %v520 = vadd.f32 %v430, %v519
        %v521 = vpop.f32.mrb[0].mxu0
        %522 = vdwg.mxu0
        %523 = vmatprep.subr.mxu0 0.0
        %v524 = vand.u32 %v409, 4294901760
        %v525 = vsub.f32 %v409, %v524
        %v526 = vand.u32 %v525, 4294901760
        %v527 = vsub.f32 %v525, %v526
        %v528 = vand.u32 %v527, 4294901760
        %529 = vmatpush1.msra.mxu0 %v528
        %530 = vmatprep.subr.mxu0 0.0
        %v531 = vand.u32 %v410, 4294901760
        %v532 = vsub.f32 %v410, %v531
        %v533 = vand.u32 %v532, 4294901760
        %v534 = vsub.f32 %v532, %v533
        %v535 = vand.u32 %v534, 4294901760
        %536 = vmatpush1.msra.mxu0 %v535
        %537 = vmatprep.subr.mxu0 0.0
        %v538 = vand.u32 %v411, 4294901760
        %v539 = vsub.f32 %v411, %v538
        %v540 = vand.u32 %v539, 4294901760
        %v541 = vsub.f32 %v539, %v540
        %v542 = vand.u32 %v541, 4294901760
        %543 = vmatpush1.msra.mxu0 %v542
        %544 = vmatprep.subr.mxu0 0.0
        %v545 = vand.u32 %v412, 4294901760
        %v546 = vsub.f32 %v412, %v545
        %v547 = vand.u32 %v546, 4294901760
        %v548 = vsub.f32 %v546, %v547
        %v549 = vand.u32 %v548, 4294901760
        %550 = vmatpush1.msra.mxu0 %v549
        %551 = vmatprep.subr.mxu0 0.0
        %v552 = vand.u32 %v413, 4294901760
        %v553 = vsub.f32 %v413, %v552
        %v554 = vand.u32 %v553, 4294901760
        %v555 = vsub.f32 %v553, %v554
        %v556 = vand.u32 %v555, 4294901760
        %557 = vmatpush1.msra.mxu0 %v556
        %558 = vmatprep.subr.mxu0 0.0
        %v559 = vand.u32 %v414, 4294901760
        %v560 = vsub.f32 %v414, %v559
        %v561 = vand.u32 %v560, 4294901760
        %v562 = vsub.f32 %v560, %v561
        %v563 = vand.u32 %v562, 4294901760
        %564 = vmatpush1.msra.mxu0 %v563
        %565 = vmatprep.subr.mxu0 0.0
        %v566 = vand.u32 %v415, 4294901760
        %v567 = vsub.f32 %v415, %v566
        %v568 = vand.u32 %v567, 4294901760
        %v569 = vsub.f32 %v567, %v568
        %v570 = vand.u32 %v569, 4294901760
        %571 = vmatpush1.msra.mxu0 %v570
        %572 = vmatprep.subr.mxu0 0.0
        %v573 = vand.u32 %v416, 4294901760
        %v574 = vsub.f32 %v416, %v573
        %v575 = vand.u32 %v574, 4294901760
        %v576 = vsub.f32 %v574, %v575
        %v577 = vand.u32 %v576, 4294901760
        %578 = vmatpush1.msra.mxu0 %v577
        %579 = vmatprep.subr.mxu0 0.0
        %v580 = vand.u32 %v417, 4294901760
        %v581 = vsub.f32 %v417, %v580
        %v582 = vand.u32 %v581, 4294901760
        %v583 = vsub.f32 %v581, %v582
        %v584 = vand.u32 %v583, 4294901760
        %585 = vmatpush1.msra.mxu0 %v584
        %586 = vmatprep.subr.mxu0 0.0
        %v587 = vand.u32 %v418, 4294901760
        %v588 = vsub.f32 %v418, %v587
        %v589 = vand.u32 %v588, 4294901760
        %v590 = vsub.f32 %v588, %v589
        %v591 = vand.u32 %v590, 4294901760
        %592 = vmatpush1.msra.mxu0 %v591
        %593 = vmatprep.subr.mxu0 0.0
        %v594 = vand.u32 %v419, 4294901760
        %v595 = vsub.f32 %v419, %v594
        %v596 = vand.u32 %v595, 4294901760
        %v597 = vsub.f32 %v595, %v596
        %v598 = vand.u32 %v597, 4294901760
        %599 = vmatpush1.msra.mxu0 %v598
        %600 = vmatprep.subr.mxu0 0.0
        %v601 = vand.u32 %v420, 4294901760
        %v602 = vsub.f32 %v420, %v601
        %v603 = vand.u32 %v602, 4294901760
        %v604 = vsub.f32 %v602, %v603
        %v605 = vand.u32 %v604, 4294901760
        %606 = vmatpush1.msra.mxu0 %v605
        %607 = vmatprep.subr.mxu0 0.0
        %v608 = vand.u32 %v421, 4294901760
        %v609 = vsub.f32 %v421, %v608
        %v610 = vand.u32 %v609, 4294901760
        %v611 = vsub.f32 %v609, %v610
        %v612 = vand.u32 %v611, 4294901760
        %613 = vmatpush1.msra.mxu0 %v612
        %614 = vmatprep.subr.mxu0 0.0
        %v615 = vand.u32 %v422, 4294901760
        %v616 = vsub.f32 %v422, %v615
        %v617 = vand.u32 %v616, 4294901760
        %v618 = vsub.f32 %v616, %v617
        %v619 = vand.u32 %v618, 4294901760
        %620 = vmatpush1.msra.mxu0 %v619
        %621 = vmatprep.subr.mxu0 0.0
        %v622 = vand.u32 %v423, 4294901760
        %v623 = vsub.f32 %v423, %v622
        %v624 = vand.u32 %v623, 4294901760
        %v625 = vsub.f32 %v623, %v624
        %v626 = vand.u32 %v625, 4294901760
        %627 = vmatpush1.msra.mxu0 %v626
        %628 = vmatprep.subr.mxu0 0.0
        %v629 = vand.u32 %v424, 4294901760
        %v630 = vsub.f32 %v424, %v629
        %v631 = vand.u32 %v630, 4294901760
        %v632 = vsub.f32 %v630, %v631
        %v633 = vand.u32 %v632, 4294901760
        %634 = vmatpush1.msra.mxu0 %v633
        %635 = vmatprep.subr.mxu0 0.0
        %636 = vmatpush1.msra.mxu0 0.0
        %637 = vmatprep.subr.mxu0 0.0
        %638 = vmatpush1.msra.mxu0 0.0
        %639 = vmatprep.subr.mxu0 0.0
        %640 = vmatpush1.msra.mxu0 0.0
        %641 = vmatprep.subr.mxu0 0.0
        %642 = vmatpush1.msra.mxu0 0.0
        %643 = vmatprep.subr.mxu0 0.0
        %644 = vmatpush1.msra.mxu0 0.0
        %645 = vmatprep.subr.mxu0 0.0
        %646 = vmatpush1.msra.mxu0 0.0
        %647 = vmatprep.subr.mxu0 0.0
        %648 = vmatpush1.msra.mxu0 0.0
        %649 = vmatprep.subr.mxu0 0.0
        %650 = vmatpush1.msra.mxu0 0.0
        %651 = vmatprep.subr.mxu0 0.0
        %652 = vmatpush1.msra.mxu0 0.0
        %653 = vmatprep.subr.mxu0 0.0
        %654 = vmatpush1.msra.mxu0 0.0
        %655 = vmatprep.subr.mxu0 0.0
        %656 = vmatpush1.msra.mxu0 0.0
        %657 = vmatprep.subr.mxu0 0.0
        %658 = vmatpush1.msra.mxu0 0.0
        %659 = vmatprep.subr.mxu0 0.0
        %660 = vmatpush1.msra.mxu0 0.0
        %661 = vmatprep.subr.mxu0 0.0
        %662 = vmatpush1.msra.mxu0 0.0
        %663 = vmatprep.subr.mxu0 0.0
        %664 = vmatpush1.msra.mxu0 0.0
        %665 = vmatprep.subr.mxu0 0.0
        %666 = vmatpush1.msra.mxu0 0.0
        %667 = vmatprep.mubr.f32.mxu0 0.0
        %v668 = vand.u32 %v408, 4294901760
        %669 = vmatmul.mubr.f32.gmra.mrb[0].mxu0 %v668
        %v670 = vpop.f32.mrb[0].mxu0
        %v671 = vadd.f32 %v520, %v670
        %v672 = vpop.f32.mrb[0].mxu0
        %673 = vdwg.mxu0
        %674 = vmatprep.subr.mxu0 0.0
        %v675 = vand.u32 %v409, 4294901760
        %v676 = vsub.f32 %v409, %v675
        %677 = vmatpush1.msra.mxu0 %v676
        %678 = vmatprep.subr.mxu0 0.0
        %v679 = vand.u32 %v410, 4294901760
        %v680 = vsub.f32 %v410, %v679
        %681 = vmatpush1.msra.mxu0 %v680
        %682 = vmatprep.subr.mxu0 0.0
        %v683 = vand.u32 %v411, 4294901760
        %v684 = vsub.f32 %v411, %v683
        %685 = vmatpush1.msra.mxu0 %v684
        %686 = vmatprep.subr.mxu0 0.0
        %v687 = vand.u32 %v412, 4294901760
        %v688 = vsub.f32 %v412, %v687
        %689 = vmatpush1.msra.mxu0 %v688
        %690 = vmatprep.subr.mxu0 0.0
        %v691 = vand.u32 %v413, 4294901760
        %v692 = vsub.f32 %v413, %v691
        %693 = vmatpush1.msra.mxu0 %v692
        %694 = vmatprep.subr.mxu0 0.0
        %v695 = vand.u32 %v414, 4294901760
        %v696 = vsub.f32 %v414, %v695
        %697 = vmatpush1.msra.mxu0 %v696
        %698 = vmatprep.subr.mxu0 0.0
        %v699 = vand.u32 %v415, 4294901760
        %v700 = vsub.f32 %v415, %v699
        %701 = vmatpush1.msra.mxu0 %v700
        %702 = vmatprep.subr.mxu0 0.0
        %v703 = vand.u32 %v416, 4294901760
        %v704 = vsub.f32 %v416, %v703
        %705 = vmatpush1.msra.mxu0 %v704
        %706 = vmatprep.subr.mxu0 0.0
        %v707 = vand.u32 %v417, 4294901760
        %v708 = vsub.f32 %v417, %v707
        %709 = vmatpush1.msra.mxu0 %v708
        %710 = vmatprep.subr.mxu0 0.0
        %v711 = vand.u32 %v418, 4294901760
        %v712 = vsub.f32 %v418, %v711
        %713 = vmatpush1.msra.mxu0 %v712
        %714 = vmatprep.subr.mxu0 0.0
        %v715 = vand.u32 %v419, 4294901760
        %v716 = vsub.f32 %v419, %v715
        %717 = vmatpush1.msra.mxu0 %v716
        %718 = vmatprep.subr.mxu0 0.0
        %v719 = vand.u32 %v420, 4294901760
        %v720 = vsub.f32 %v420, %v719
        %721 = vmatpush1.msra.mxu0 %v720
        %722 = vmatprep.subr.mxu0 0.0
        %v723 = vand.u32 %v421, 4294901760
        %v724 = vsub.f32 %v421, %v723
        %725 = vmatpush1.msra.mxu0 %v724
        %726 = vmatprep.subr.mxu0 0.0
        %v727 = vand.u32 %v422, 4294901760
        %v728 = vsub.f32 %v422, %v727
        %729 = vmatpush1.msra.mxu0 %v728
        %730 = vmatprep.subr.mxu0 0.0
        %v731 = vand.u32 %v423, 4294901760
        %v732 = vsub.f32 %v423, %v731
        %733 = vmatpush1.msra.mxu0 %v732
        %734 = vmatprep.subr.mxu0 0.0
        %v735 = vand.u32 %v424, 4294901760
        %v736 = vsub.f32 %v424, %v735
        %737 = vmatpush1.msra.mxu0 %v736
        %738 = vmatprep.subr.mxu0 0.0
        %739 = vmatpush1.msra.mxu0 0.0
        %740 = vmatprep.subr.mxu0 0.0
        %741 = vmatpush1.msra.mxu0 0.0
        %742 = vmatprep.subr.mxu0 0.0
        %743 = vmatpush1.msra.mxu0 0.0
        %744 = vmatprep.subr.mxu0 0.0
        %745 = vmatpush1.msra.mxu0 0.0
        %746 = vmatprep.subr.mxu0 0.0
        %747 = vmatpush1.msra.mxu0 0.0
        %748 = vmatprep.subr.mxu0 0.0
        %749 = vmatpush1.msra.mxu0 0.0
        %750 = vmatprep.subr.mxu0 0.0
        %751 = vmatpush1.msra.mxu0 0.0
        %752 = vmatprep.subr.mxu0 0.0
        %753 = vmatpush1.msra.mxu0 0.0
        %754 = vmatprep.subr.mxu0 0.0
        %755 = vmatpush1.msra.mxu0 0.0
        %756 = vmatprep.subr.mxu0 0.0
        %757 = vmatpush1.msra.mxu0 0.0
        %758 = vmatprep.subr.mxu0 0.0
        %759 = vmatpush1.msra.mxu0 0.0
        %760 = vmatprep.subr.mxu0 0.0
        %761 = vmatpush1.msra.mxu0 0.0
        %762 = vmatprep.subr.mxu0 0.0
        %763 = vmatpush1.msra.mxu0 0.0
        %764 = vmatprep.subr.mxu0 0.0
        %765 = vmatpush1.msra.mxu0 0.0
        %766 = vmatprep.subr.mxu0 0.0
        %767 = vmatpush1.msra.mxu0 0.0
        %768 = vmatprep.subr.mxu0 0.0
        %769 = vmatpush1.msra.mxu0 0.0
        %770 = vmatprep.mubr.f32.mxu0 0.0
        %v771 = vand.u32 %v408, 4294901760
        %v772 = vsub.f32 %v408, %v771
        %773 = vmatmul.mubr.f32.gmra.mrb[0].mxu0 %v772
        %v774 = vpop.f32.mrb[0].mxu0
        %v775 = vadd.f32 %v671, %v774
        %v776 = vpop.f32.mrb[0].mxu0
        %777 = vdwg.mxu0
        %778 = vmatprep.subr.mxu0 0.0
        %v779 = vand.u32 %v409, 4294901760
        %780 = vmatpush1.msra.mxu0 %v779
        %781 = vmatprep.subr.mxu0 0.0
        %v782 = vand.u32 %v410, 4294901760
        %783 = vmatpush1.msra.mxu0 %v782
        %784 = vmatprep.subr.mxu0 0.0
        %v785 = vand.u32 %v411, 4294901760
        %786 = vmatpush1.msra.mxu0 %v785
        %787 = vmatprep.subr.mxu0 0.0
        %v788 = vand.u32 %v412, 4294901760
        %789 = vmatpush1.msra.mxu0 %v788
        %790 = vmatprep.subr.mxu0 0.0
        %v791 = vand.u32 %v413, 4294901760
        %792 = vmatpush1.msra.mxu0 %v791
        %793 = vmatprep.subr.mxu0 0.0
        %v794 = vand.u32 %v414, 4294901760
        %795 = vmatpush1.msra.mxu0 %v794
        %796 = vmatprep.subr.mxu0 0.0
        %v797 = vand.u32 %v415, 4294901760
        %798 = vmatpush1.msra.mxu0 %v797
        %799 = vmatprep.subr.mxu0 0.0
        %v800 = vand.u32 %v416, 4294901760
        %801 = vmatpush1.msra.mxu0 %v800
        %802 = vmatprep.subr.mxu0 0.0
        %v803 = vand.u32 %v417, 4294901760
        %804 = vmatpush1.msra.mxu0 %v803
        %805 = vmatprep.subr.mxu0 0.0
        %v806 = vand.u32 %v418, 4294901760
        %807 = vmatpush1.msra.mxu0 %v806
        %808 = vmatprep.subr.mxu0 0.0
        %v809 = vand.u32 %v419, 4294901760
        %810 = vmatpush1.msra.mxu0 %v809
        %811 = vmatprep.subr.mxu0 0.0
        %v812 = vand.u32 %v420, 4294901760
        %813 = vmatpush1.msra.mxu0 %v812
        %814 = vmatprep.subr.mxu0 0.0
        %v815 = vand.u32 %v421, 4294901760
        %816 = vmatpush1.msra.mxu0 %v815
        %817 = vmatprep.subr.mxu0 0.0
        %v818 = vand.u32 %v422, 4294901760
        %819 = vmatpush1.msra.mxu0 %v818
        %820 = vmatprep.subr.mxu0 0.0
        %v821 = vand.u32 %v423, 4294901760
        %822 = vmatpush1.msra.mxu0 %v821
        %823 = vmatprep.subr.mxu0 0.0
        %v824 = vand.u32 %v424, 4294901760
        %825 = vmatpush1.msra.mxu0 %v824
        %826 = vmatprep.subr.mxu0 0.0
        %827 = vmatpush1.msra.mxu0 0.0
        %828 = vmatprep.subr.mxu0 0.0
        %829 = vmatpush1.msra.mxu0 0.0
        %830 = vmatprep.subr.mxu0 0.0
        %831 = vmatpush1.msra.mxu0 0.0
        %832 = vmatprep.subr.mxu0 0.0
        %833 = vmatpush1.msra.mxu0 0.0
        %834 = vmatprep.subr.mxu0 0.0
        %835 = vmatpush1.msra.mxu0 0.0
        %836 = vmatprep.subr.mxu0 0.0
        %837 = vmatpush1.msra.mxu0 0.0
        %838 = vmatprep.subr.mxu0 0.0
        %839 = vmatpush1.msra.mxu0 0.0
        %840 = vmatprep.subr.mxu0 0.0
        %841 = vmatpush1.msra.mxu0 0.0
        %842 = vmatprep.subr.mxu0 0.0
        %843 = vmatpush1.msra.mxu0 0.0
        %844 = vmatprep.subr.mxu0 0.0
        %845 = vmatpush1.msra.mxu0 0.0
        %846 = vmatprep.subr.mxu0 0.0
        %847 = vmatpush1.msra.mxu0 0.0
        %848 = vmatprep.subr.mxu0 0.0
        %849 = vmatpush1.msra.mxu0 0.0
        %850 = vmatprep.subr.mxu0 0.0
        %851 = vmatpush1.msra.mxu0 0.0
        %852 = vmatprep.subr.mxu0 0.0
        %853 = vmatpush1.msra.mxu0 0.0
        %854 = vmatprep.subr.mxu0 0.0
        %855 = vmatpush1.msra.mxu0 0.0
        %856 = vmatprep.subr.mxu0 0.0
        %857 = vmatpush1.msra.mxu0 0.0
        %858 = vmatprep.mubr.f32.mxu0 0.0
        %v859 = vand.u32 %v408, 4294901760
        %v860 = vsub.f32 %v408, %v859
        %v861 = vand.u32 %v860, 4294901760
        %862 = vmatmul.mubr.f32.gmra.mrb[0].mxu0 %v861
        %v863 = vpop.f32.mrb[0].mxu0
        %v864 = vadd.f32 %v775, %v863
        %v865 = vpop.f32.mrb[0].mxu0
        %866 = vdwg.mxu0
        %867 = vmatprep.subr.mxu0 0.0
        %v868 = vand.u32 %v409, 4294901760
        %v869 = vsub.f32 %v409, %v868
        %v870 = vand.u32 %v869, 4294901760
        %871 = vmatpush1.msra.mxu0 %v870
        %872 = vmatprep.subr.mxu0 0.0
        %v873 = vand.u32 %v410, 4294901760
        %v874 = vsub.f32 %v410, %v873
        %v875 = vand.u32 %v874, 4294901760
        %876 = vmatpush1.msra.mxu0 %v875
        %877 = vmatprep.subr.mxu0 0.0
        %v878 = vand.u32 %v411, 4294901760
        %v879 = vsub.f32 %v411, %v878
        %v880 = vand.u32 %v879, 4294901760
        %881 = vmatpush1.msra.mxu0 %v880
        %882 = vmatprep.subr.mxu0 0.0
        %v883 = vand.u32 %v412, 4294901760
        %v884 = vsub.f32 %v412, %v883
        %v885 = vand.u32 %v884, 4294901760
        %886 = vmatpush1.msra.mxu0 %v885
        %887 = vmatprep.subr.mxu0 0.0
        %v888 = vand.u32 %v413, 4294901760
        %v889 = vsub.f32 %v413, %v888
        %v890 = vand.u32 %v889, 4294901760
        %891 = vmatpush1.msra.mxu0 %v890
        %892 = vmatprep.subr.mxu0 0.0
        %v893 = vand.u32 %v414, 4294901760
        %v894 = vsub.f32 %v414, %v893
        %v895 = vand.u32 %v894, 4294901760
        %896 = vmatpush1.msra.mxu0 %v895
        %897 = vmatprep.subr.mxu0 0.0
        %v898 = vand.u32 %v415, 4294901760
        %v899 = vsub.f32 %v415, %v898
        %v900 = vand.u32 %v899, 4294901760
        %901 = vmatpush1.msra.mxu0 %v900
        %902 = vmatprep.subr.mxu0 0.0
        %v903 = vand.u32 %v416, 4294901760
        %v904 = vsub.f32 %v416, %v903
        %v905 = vand.u32 %v904, 4294901760
        %906 = vmatpush1.msra.mxu0 %v905
        %907 = vmatprep.subr.mxu0 0.0
        %v908 = vand.u32 %v417, 4294901760
        %v909 = vsub.f32 %v417, %v908
        %v910 = vand.u32 %v909, 4294901760
        %911 = vmatpush1.msra.mxu0 %v910
        %912 = vmatprep.subr.mxu0 0.0
        %v913 = vand.u32 %v418, 4294901760
        %v914 = vsub.f32 %v418, %v913
        %v915 = vand.u32 %v914, 4294901760
        %916 = vmatpush1.msra.mxu0 %v915
        %917 = vmatprep.subr.mxu0 0.0
        %v918 = vand.u32 %v419, 4294901760
        %v919 = vsub.f32 %v419, %v918
        %v920 = vand.u32 %v919, 4294901760
        %921 = vmatpush1.msra.mxu0 %v920
        %922 = vmatprep.subr.mxu0 0.0
        %v923 = vand.u32 %v420, 4294901760
        %v924 = vsub.f32 %v420, %v923
        %v925 = vand.u32 %v924, 4294901760
        %926 = vmatpush1.msra.mxu0 %v925
        %927 = vmatprep.subr.mxu0 0.0
        %v928 = vand.u32 %v421, 4294901760
        %v929 = vsub.f32 %v421, %v928
        %v930 = vand.u32 %v929, 4294901760
        %931 = vmatpush1.msra.mxu0 %v930
        %932 = vmatprep.subr.mxu0 0.0
        %v933 = vand.u32 %v422, 4294901760
        %v934 = vsub.f32 %v422, %v933
        %v935 = vand.u32 %v934, 4294901760
        %936 = vmatpush1.msra.mxu0 %v935
        %937 = vmatprep.subr.mxu0 0.0
        %v938 = vand.u32 %v423, 4294901760
        %v939 = vsub.f32 %v423, %v938
        %v940 = vand.u32 %v939, 4294901760
        %941 = vmatpush1.msra.mxu0 %v940
        %942 = vmatprep.subr.mxu0 0.0
        %v943 = vand.u32 %v424, 4294901760
        %v944 = vsub.f32 %v424, %v943
        %v945 = vand.u32 %v944, 4294901760
        %946 = vmatpush1.msra.mxu0 %v945
        %947 = vmatprep.subr.mxu0 0.0
        %948 = vmatpush1.msra.mxu0 0.0
        %949 = vmatprep.subr.mxu0 0.0
        %950 = vmatpush1.msra.mxu0 0.0
        %951 = vmatprep.subr.mxu0 0.0
        %952 = vmatpush1.msra.mxu0 0.0
        %953 = vmatprep.subr.mxu0 0.0
        %954 = vmatpush1.msra.mxu0 0.0
        %955 = vmatprep.subr.mxu0 0.0
        %956 = vmatpush1.msra.mxu0 0.0
        %957 = vmatprep.subr.mxu0 0.0
        %958 = vmatpush1.msra.mxu0 0.0
        %959 = vmatprep.subr.mxu0 0.0
        %960 = vmatpush1.msra.mxu0 0.0
        %961 = vmatprep.subr.mxu0 0.0
        %962 = vmatpush1.msra.mxu0 0.0
        %963 = vmatprep.subr.mxu0 0.0
        %964 = vmatpush1.msra.mxu0 0.0
        %965 = vmatprep.subr.mxu0 0.0
        %966 = vmatpush1.msra.mxu0 0.0
        %967 = vmatprep.subr.mxu0 0.0
        %968 = vmatpush1.msra.mxu0 0.0
        %969 = vmatprep.subr.mxu0 0.0
        %970 = vmatpush1.msra.mxu0 0.0
        %971 = vmatprep.subr.mxu0 0.0
        %972 = vmatpush1.msra.mxu0 0.0
        %973 = vmatprep.subr.mxu0 0.0
        %974 = vmatpush1.msra.mxu0 0.0
        %975 = vmatprep.subr.mxu0 0.0
        %976 = vmatpush1.msra.mxu0 0.0
        %977 = vmatprep.subr.mxu0 0.0
        %978 = vmatpush1.msra.mxu0 0.0
        %979 = vmatprep.mubr.f32.mxu0 0.0
        %v980 = vand.u32 %v408, 4294901760
        %981 = vmatmul.mubr.f32.gmra.mrb[0].mxu0 %v980
        %v982 = vpop.f32.mrb[0].mxu0
        %v983 = vadd.f32 %v864, %v982
        %v984 = vpop.f32.mrb[0].mxu0
        %985 = vdwg.mxu0
        %986 = vmatprep.subr.mxu0 0.0
        %v987 = vand.u32 %v409, 4294901760
        %988 = vmatpush1.msra.mxu0 %v987
        %989 = vmatprep.subr.mxu0 0.0
        %v990 = vand.u32 %v410, 4294901760
        %991 = vmatpush1.msra.mxu0 %v990
        %992 = vmatprep.subr.mxu0 0.0
        %v993 = vand.u32 %v411, 4294901760
        %994 = vmatpush1.msra.mxu0 %v993
        %995 = vmatprep.subr.mxu0 0.0
        %v996 = vand.u32 %v412, 4294901760
        %997 = vmatpush1.msra.mxu0 %v996
        %998 = vmatprep.subr.mxu0 0.0
        %v999 = vand.u32 %v413, 4294901760
        %1000 = vmatpush1.msra.mxu0 %v999
        %1001 = vmatprep.subr.mxu0 0.0
        %v1002 = vand.u32 %v414, 4294901760
        %1003 = vmatpush1.msra.mxu0 %v1002
        %1004 = vmatprep.subr.mxu0 0.0
        %v1005 = vand.u32 %v415, 4294901760
        %1006 = vmatpush1.msra.mxu0 %v1005
        %1007 = vmatprep.subr.mxu0 0.0
        %v1008 = vand.u32 %v416, 4294901760
        %1009 = vmatpush1.msra.mxu0 %v1008
        %1010 = vmatprep.subr.mxu0 0.0
        %v1011 = vand.u32 %v417, 4294901760
        %1012 = vmatpush1.msra.mxu0 %v1011
        %1013 = vmatprep.subr.mxu0 0.0
        %v1014 = vand.u32 %v418, 4294901760
        %1015 = vmatpush1.msra.mxu0 %v1014
        %1016 = vmatprep.subr.mxu0 0.0
        %v1017 = vand.u32 %v419, 4294901760
        %1018 = vmatpush1.msra.mxu0 %v1017
        %1019 = vmatprep.subr.mxu0 0.0
        %v1020 = vand.u32 %v420, 4294901760
        %1021 = vmatpush1.msra.mxu0 %v1020
        %1022 = vmatprep.subr.mxu0 0.0
        %v1023 = vand.u32 %v421, 4294901760
        %1024 = vmatpush1.msra.mxu0 %v1023
        %1025 = vmatprep.subr.mxu0 0.0
        %v1026 = vand.u32 %v422, 4294901760
        %1027 = vmatpush1.msra.mxu0 %v1026
        %1028 = vmatprep.subr.mxu0 0.0
        %v1029 = vand.u32 %v423, 4294901760
        %1030 = vmatpush1.msra.mxu0 %v1029
        %1031 = vmatprep.subr.mxu0 0.0
        %v1032 = vand.u32 %v424, 4294901760
        %1033 = vmatpush1.msra.mxu0 %v1032
        %1034 = vmatprep.subr.mxu0 0.0
        %1035 = vmatpush1.msra.mxu0 0.0
        %1036 = vmatprep.subr.mxu0 0.0
        %1037 = vmatpush1.msra.mxu0 0.0
        %1038 = vmatprep.subr.mxu0 0.0
        %1039 = vmatpush1.msra.mxu0 0.0
        %1040 = vmatprep.subr.mxu0 0.0
        %1041 = vmatpush1.msra.mxu0 0.0
        %1042 = vmatprep.subr.mxu0 0.0
        %1043 = vmatpush1.msra.mxu0 0.0
        %1044 = vmatprep.subr.mxu0 0.0
        %1045 = vmatpush1.msra.mxu0 0.0
        %1046 = vmatprep.subr.mxu0 0.0
        %1047 = vmatpush1.msra.mxu0 0.0
        %1048 = vmatprep.subr.mxu0 0.0
        %1049 = vmatpush1.msra.mxu0 0.0
        %1050 = vmatprep.subr.mxu0 0.0
        %1051 = vmatpush1.msra.mxu0 0.0
        %1052 = vmatprep.subr.mxu0 0.0
        %1053 = vmatpush1.msra.mxu0 0.0
        %1054 = vmatprep.subr.mxu0 0.0
        %1055 = vmatpush1.msra.mxu0 0.0
        %1056 = vmatprep.subr.mxu0 0.0
        %1057 = vmatpush1.msra.mxu0 0.0
        %1058 = vmatprep.subr.mxu0 0.0
        %1059 = vmatpush1.msra.mxu0 0.0
        %1060 = vmatprep.subr.mxu0 0.0
        %1061 = vmatpush1.msra.mxu0 0.0
        %1062 = vmatprep.subr.mxu0 0.0
        %1063 = vmatpush1.msra.mxu0 0.0
        %1064 = vmatprep.subr.mxu0 0.0
        %1065 = vmatpush1.msra.mxu0 0.0
        %1066 = vmatprep.mubr.f32.mxu0 0.0
        %v1067 = vand.u32 %v408, 4294901760
        %1068 = vmatmul.mubr.f32.gmra.mrb[0].mxu0 %v1067
        %v1069 = vpop.f32.mrb[0].mxu0
        %v1070 = vadd.f32 %v983, %v1069
        %v1071 = vpop.f32.mrb[0].mxu0
        %1072 = vdwg.mxu0
        %v1073 = vmax.f32 %v1070, 0.0
        %s1074 = sld [smem:[#allocation3]]
        %s1075 = smul.u32 %s34, 8
        %s1076 = smul.u32 %s35, 128
        %v1077 = vlaneseq
        %v1078 = vshrl.u32 %v1077, 7
        %v1079 = vstv %s1075
        %v1080 = vadd.s32 %v1078, %v1079
        %v1081 = vlaneseq
        %v1082 = vand.u32 %v1081, 127
        %v1083 = vstv %s1076
        %v1084 = vadd.s32 %v1082, %v1083
        %v1085 = vmul.u32 %v1080, 256
        %v1086 = vadd.s32 %v1085, %v1084
        %s1087 = smul.u32 %s1074, 2654435769
        %v1088 = vstv %s1087
        %v1089 = vadd.s32 %v1086, %v1088
        %v1090 = vshrl.u32 %v1089, 16
        %v1091 = vxor.u32 %v1089, %v1090
        %v1092 = vmul.u32 %v1091, 2246822507
        %v1093 = vshrl.u32 %v1092, 13
        %v1094 = vxor.u32 %v1092, %v1093
        %v1095 = vmul.u32 %v1094, 3266489909
        %v1096 = vshrl.u32 %v1095, 16
        %v1097 = vxor.u32 %v1095, %v1096
        %v1098 = vstv %s1074
        %v1099 = vxor.u32 %v1097, %v1098
        %v1100 = vshrl.u32 %v1099, 16
        %v1101 = vxor.u32 %v1099, %v1100
        %v1102 = vmul.u32 %v1101, 2246822507
        %v1103 = vshrl.u32 %v1102, 13
        %v1104 = vxor.u32 %v1102, %v1103
        %v1105 = vmul.u32 %v1104, 3266489909
        %v1106 = vshrl.u32 %v1105, 16
        %v1107 = vxor.u32 %v1105, %v1106
        %vm1108 = vcmp.ge.u32.totalorder %v1107, 429496730
        %v1109 = vmul.f32 %v1073, 1.1111112
        %v1110 = vsel %vm1108, %v1109, 0.0
        %v1111 = vld [vmem:[#allocation2] sm:$0xff]
        %v1112 = vld [vmem:[%s355] sm:$0xff]
        %v1113 = vld [vmem:[%s355 + $0x8] sm:$0xff]
        %v1114 = vld [vmem:[%s355 + $0x10] sm:$0xff]
        %v1115 = vld [vmem:[%s355 + $0x18] sm:$0xff]
        %v1116 = vld [vmem:[%s355 + $0x20] sm:$0xff]
        %v1117 = vld [vmem:[%s355 + $0x28] sm:$0xff]
        %v1118 = vld [vmem:[%s355 + $0x30] sm:$0xff]
        %v1119 = vld [vmem:[%s355 + $0x38] sm:$0xff]
        %v1120 = vld [vmem:[%s355 + $0x40] sm:$0xff]
        %v1121 = vld [vmem:[%s355 + $0x48] sm:$0xff]
        %v1122 = vld [vmem:[%s355 + $0x50] sm:$0xff]
        %v1123 = vld [vmem:[%s355 + $0x58] sm:$0xff]
        %v1124 = vld [vmem:[%s355 + $0x60] sm:$0xff]
        %v1125 = vld [vmem:[%s355 + $0x68] sm:$0xff]
        %v1126 = vld [vmem:[%s355 + $0x70] sm:$0xff]
        %v1127 = vld [vmem:[%s355 + $0x78] sm:$0xff]
        %1128 = vmatprep.subr.mxu0 0.0
        %v1129 = vand.u32 %v1112, 4294901760
        %1130 = vmatpush1.msra.mxu0 %v1129
        %1131 = vmatprep.subr.mxu0 0.0
        %v1132 = vand.u32 %v1113, 4294901760
        %1133 = vmatpush1.msra.mxu0 %v1132
        %1134 = vmatprep.subr.mxu0 0.0
        %v1135 = vand.u32 %v1114, 4294901760
        %1136 = vmatpush1.msra.mxu0 %v1135
        %1137 = vmatprep.subr.mxu0 0.0
        %v1138 = vand.u32 %v1115, 4294901760
        %1139 = vmatpush1.msra.mxu0 %v1138
        %1140 = vmatprep.subr.mxu0 0.0
        %v1141 = vand.u32 %v1116, 4294901760
        %1142 = vmatpush1.msra.mxu0 %v1141
        %1143 = vmatprep.subr.mxu0 0.0
        %v1144 = vand.u32 %v1117, 4294901760
        %1145 = vmatpush1.msra.mxu0 %v1144
        %1146 = vmatprep.subr.mxu0 0.0
        %v1147 = vand.u32 %v1118, 4294901760
        %1148 = vmatpush1.msra.mxu0 %v1147
        %1149 = vmatprep.subr.mxu0 0.0
        %v1150 = vand.u32 %v1119, 4294901760
        %1151 = vmatpush1.msra.mxu0 %v1150
        %1152 = vmatprep.subr.mxu0 0.0
        %v1153 = vand.u32 %v1120, 4294901760
        %1154 = vmatpush1.msra.mxu0 %v1153
        %1155 = vmatprep.subr.mxu0 0.0
        %v1156 = vand.u32 %v1121, 4294901760
        %1157 = vmatpush1.msra.mxu0 %v1156
        %1158 = vmatprep.subr.mxu0 0.0
        %v1159 = vand.u32 %v1122, 4294901760
        %1160 = vmatpush1.msra.mxu0 %v1159
        %1161 = vmatprep.subr.mxu0 0.0
        %v1162 = vand.u32 %v1123, 4294901760
        %1163 = vmatpush1.msra.mxu0 %v1162
        %1164 = vmatprep.subr.mxu0 0.0
        %v1165 = vand.u32 %v1124, 4294901760
        %1166 = vmatpush1.msra.mxu0 %v1165
        %1167 = vmatprep.subr.mxu0 0.0
        %v1168 = vand.u32 %v1125, 4294901760
        %1169 = vmatpush1.msra.mxu0 %v1168
        %1170 = vmatprep.subr.mxu0 0.0
        %v1171 = vand.u32 %v1126, 4294901760
        %1172 = vmatpush1.msra.mxu0 %v1171
        %1173 = vmatprep.subr.mxu0 0.0
        %v1174 = vand.u32 %v1127, 4294901760
        %1175 = vmatpush1.msra.mxu0 %v1174
        %1176 = vmatprep.subr.mxu0 0.0
        %1177 = vmatpush1.msra.mxu0 0.0
        %1178 = vmatprep.subr.mxu0 0.0
        %1179 = vmatpush1.msra.mxu0 0.0
        %1180 = vmatprep.subr.mxu0 0.0
        %1181 = vmatpush1.msra.mxu0 0.0
        %1182 = vmatprep.subr.mxu0 0.0
        %1183 = vmatpush1.msra.mxu0 0.0
        %1184 = vmatprep.subr.mxu0 0.0
        %1185 = vmatpush1.msra.mxu0 0.0
        %1186 = vmatprep.subr.mxu0 0.0
        %1187 = vmatpush1.msra.mxu0 0.0
        %1188 = vmatprep.subr.mxu0 0.0
        %1189 = vmatpush1.msra.mxu0 0.0
        %1190 = vmatprep.subr.mxu0 0.0
        %1191 = vmatpush1.msra.mxu0 0.0
        %1192 = vmatprep.subr.mxu0 0.0
        %1193 = vmatpush1.msra.mxu0 0.0
        %1194 = vmatprep.subr.mxu0 0.0
        %1195 = vmatpush1.msra.mxu0 0.0
        %1196 = vmatprep.subr.mxu0 0.0
        %1197 = vmatpush1.msra.mxu0 0.0
        %1198 = vmatprep.subr.mxu0 0.0
        %1199 = vmatpush1.msra.mxu0 0.0
        %1200 = vmatprep.subr.mxu0 0.0
        %1201 = vmatpush1.msra.mxu0 0.0
        %1202 = vmatprep.subr.mxu0 0.0
        %1203 = vmatpush1.msra.mxu0 0.0
        %1204 = vmatprep.subr.mxu0 0.0
        %1205 = vmatpush1.msra.mxu0 0.0
        %1206 = vmatprep.subr.mxu0 0.0
        %1207 = vmatpush1.msra.mxu0 0.0
        %1208 = vmatprep.mubr.f32.mxu0 0.0
        %v1209 = vand.u32 %v1110, 4294901760
        %v1210 = vsub.f32 %v1110, %v1209
        %v1211 = vand.u32 %v1210, 4294901760
        %v1212 = vsub.f32 %v1210, %v1211
        %v1213 = vand.u32 %v1212, 4294901760
        %1214 = vmatmul.mubr.f32.gmra.mrb[0].mxu0 %v1213
        %v1215 = vpop.f32.mrb[0].mxu0
        %v1216 = vadd.f32 0.0, %v1215
        %v1217 = vpop.f32.mrb[0].mxu0
        %1218 = vdwg.mxu0
        %1219 = vmatprep.subr.mxu0 0.0
        %v1220 = vand.u32 %v1112, 4294901760
        %v1221 = vsub.f32 %v1112, %v1220
        %v1222 = vand.u32 %v1221, 4294901760
        %v1223 = vsub.f32 %v1221, %v1222
        %v1224 = vand.u32 %v1223, 4294901760
        %1225 = vmatpush1.msra.mxu0 %v1224
        %1226 = vmatprep.subr.mxu0 0.0
        %v1227 = vand.u32 %v1113, 4294901760
        %v1228 = vsub.f32 %v1113, %v1227
        %v1229 = vand.u32 %v1228, 4294901760
        %v1230 = vsub.f32 %v1228, %v1229
        %v1231 = vand.u32 %v1230, 4294901760
        %1232 = vmatpush1.msra.mxu0 %v1231
        %1233 = vmatprep.subr.mxu0 0.0
        %v1234 = vand.u32 %v1114, 4294901760
        %v1235 = vsub.f32 %v1114, %v1234
        %v1236 = vand.u32 %v1235, 4294901760
        %v1237 = vsub.f32 %v1235, %v1236
        %v1238 = vand.u32 %v1237, 4294901760
        %1239 = vmatpush1.msra.mxu0 %v1238
        %1240 = vmatprep.subr.mxu0 0.0
        %v1241 = vand.u32 %v1115, 4294901760
        %v1242 = vsub.f32 %v1115, %v1241
        %v1243 = vand.u32 %v1242, 4294901760
        %v1244 = vsub.f32 %v1242, %v1243
        %v1245 = vand.u32 %v1244, 4294901760
        %1246 = vmatpush1.msra.mxu0 %v1245
        %1247 = vmatprep.subr.mxu0 0.0
        %v1248 = vand.u32 %v1116, 4294901760
        %v1249 = vsub.f32 %v1116, %v1248
        %v1250 = vand.u32 %v1249, 4294901760
        %v1251 = vsub.f32 %v1249, %v1250
        %v1252 = vand.u32 %v1251, 4294901760
        %1253 = vmatpush1.msra.mxu0 %v1252
        %1254 = vmatprep.subr.mxu0 0.0
        %v1255 = vand.u32 %v1117, 4294901760
        %v1256 = vsub.f32 %v1117, %v1255
        %v1257 = vand.u32 %v1256, 4294901760
        %v1258 = vsub.f32 %v1256, %v1257
        %v1259 = vand.u32 %v1258, 4294901760
        %1260 = vmatpush1.msra.mxu0 %v1259
        %1261 = vmatprep.subr.mxu0 0.0
        %v1262 = vand.u32 %v1118, 4294901760
        %v1263 = vsub.f32 %v1118, %v1262
        %v1264 = vand.u32 %v1263, 4294901760
        %v1265 = vsub.f32 %v1263, %v1264
        %v1266 = vand.u32 %v1265, 4294901760
        %1267 = vmatpush1.msra.mxu0 %v1266
        %1268 = vmatprep.subr.mxu0 0.0
        %v1269 = vand.u32 %v1119, 4294901760
        %v1270 = vsub.f32 %v1119, %v1269
        %v1271 = vand.u32 %v1270, 4294901760
        %v1272 = vsub.f32 %v1270, %v1271
        %v1273 = vand.u32 %v1272, 4294901760
        %1274 = vmatpush1.msra.mxu0 %v1273
        %1275 = vmatprep.subr.mxu0 0.0
        %v1276 = vand.u32 %v1120, 4294901760
        %v1277 = vsub.f32 %v1120, %v1276
        %v1278 = vand.u32 %v1277, 4294901760
        %v1279 = vsub.f32 %v1277, %v1278
        %v1280 = vand.u32 %v1279, 4294901760
        %1281 = vmatpush1.msra.mxu0 %v1280
        %1282 = vmatprep.subr.mxu0 0.0
        %v1283 = vand.u32 %v1121, 4294901760
        %v1284 = vsub.f32 %v1121, %v1283
        %v1285 = vand.u32 %v1284, 4294901760
        %v1286 = vsub.f32 %v1284, %v1285
        %v1287 = vand.u32 %v1286, 4294901760
        %1288 = vmatpush1.msra.mxu0 %v1287
        %1289 = vmatprep.subr.mxu0 0.0
        %v1290 = vand.u32 %v1122, 4294901760
        %v1291 = vsub.f32 %v1122, %v1290
        %v1292 = vand.u32 %v1291, 4294901760
        %v1293 = vsub.f32 %v1291, %v1292
        %v1294 = vand.u32 %v1293, 4294901760
        %1295 = vmatpush1.msra.mxu0 %v1294
        %1296 = vmatprep.subr.mxu0 0.0
        %v1297 = vand.u32 %v1123, 4294901760
        %v1298 = vsub.f32 %v1123, %v1297
        %v1299 = vand.u32 %v1298, 4294901760
        %v1300 = vsub.f32 %v1298, %v1299
        %v1301 = vand.u32 %v1300, 4294901760
        %1302 = vmatpush1.msra.mxu0 %v1301
        %1303 = vmatprep.subr.mxu0 0.0
        %v1304 = vand.u32 %v1124, 4294901760
        %v1305 = vsub.f32 %v1124, %v1304
        %v1306 = vand.u32 %v1305, 4294901760
        %v1307 = vsub.f32 %v1305, %v1306
        %v1308 = vand.u32 %v1307, 4294901760
        %1309 = vmatpush1.msra.mxu0 %v1308
        %1310 = vmatprep.subr.mxu0 0.0
        %v1311 = vand.u32 %v1125, 4294901760
        %v1312 = vsub.f32 %v1125, %v1311
        %v1313 = vand.u32 %v1312, 4294901760
        %v1314 = vsub.f32 %v1312, %v1313
        %v1315 = vand.u32 %v1314, 4294901760
        %1316 = vmatpush1.msra.mxu0 %v1315
        %1317 = vmatprep.subr.mxu0 0.0
        %v1318 = vand.u32 %v1126, 4294901760
        %v1319 = vsub.f32 %v1126, %v1318
        %v1320 = vand.u32 %v1319, 4294901760
        %v1321 = vsub.f32 %v1319, %v1320
        %v1322 = vand.u32 %v1321, 4294901760
        %1323 = vmatpush1.msra.mxu0 %v1322
        %1324 = vmatprep.subr.mxu0 0.0
        %v1325 = vand.u32 %v1127, 4294901760
        %v1326 = vsub.f32 %v1127, %v1325
        %v1327 = vand.u32 %v1326, 4294901760
        %v1328 = vsub.f32 %v1326, %v1327
        %v1329 = vand.u32 %v1328, 4294901760
        %1330 = vmatpush1.msra.mxu0 %v1329
        %1331 = vmatprep.subr.mxu0 0.0
        %1332 = vmatpush1.msra.mxu0 0.0
        %1333 = vmatprep.subr.mxu0 0.0
        %1334 = vmatpush1.msra.mxu0 0.0
        %1335 = vmatprep.subr.mxu0 0.0
        %1336 = vmatpush1.msra.mxu0 0.0
        %1337 = vmatprep.subr.mxu0 0.0
        %1338 = vmatpush1.msra.mxu0 0.0
        %1339 = vmatprep.subr.mxu0 0.0
        %1340 = vmatpush1.msra.mxu0 0.0
        %1341 = vmatprep.subr.mxu0 0.0
        %1342 = vmatpush1.msra.mxu0 0.0
        %1343 = vmatprep.subr.mxu0 0.0
        %1344 = vmatpush1.msra.mxu0 0.0
        %1345 = vmatprep.subr.mxu0 0.0
        %1346 = vmatpush1.msra.mxu0 0.0
        %1347 = vmatprep.subr.mxu0 0.0
        %1348 = vmatpush1.msra.mxu0 0.0
        %1349 = vmatprep.subr.mxu0 0.0
        %1350 = vmatpush1.msra.mxu0 0.0
        %1351 = vmatprep.subr.mxu0 0.0
        %1352 = vmatpush1.msra.mxu0 0.0
        %1353 = vmatprep.subr.mxu0 0.0
        %1354 = vmatpush1.msra.mxu0 0.0
        %1355 = vmatprep.subr.mxu0 0.0
        %1356 = vmatpush1.msra.mxu0 0.0
        %1357 = vmatprep.subr.mxu0 0.0
        %1358 = vmatpush1.msra.mxu0 0.0
        %1359 = vmatprep.subr.mxu0 0.0
        %1360 = vmatpush1.msra.mxu0 0.0
        %1361 = vmatprep.subr.mxu0 0.0
        %1362 = vmatpush1.msra.mxu0 0.0
        %1363 = vmatprep.mubr.f32.mxu0 0.0
        %v1364 = vand.u32 %v1110, 4294901760
        %1365 = vmatmul.mubr.f32.gmra.mrb[0].mxu0 %v1364
        %v1366 = vpop.f32.mrb[0].mxu0
        %v1367 = vadd.f32 %v1216, %v1366
        %v1368 = vpop.f32.mrb[0].mxu0
        %1369 = vdwg.mxu0
        %1370 = vmatprep.subr.mxu0 0.0
        %v1371 = vand.u32 %v1112, 4294901760
        %v1372 = vsub.f32 %v1112, %v1371
        %1373 = vmatpush1.msra.mxu0 %v1372
        %1374 = vmatprep.subr.mxu0 0.0
        %v1375 = vand.u32 %v1113, 4294901760
        %v1376 = vsub.f32 %v1113, %v1375
        %1377 = vmatpush1.msra.mxu0 %v1376
        %1378 = vmatprep.subr.mxu0 0.0
        %v1379 = vand.u32 %v1114, 4294901760
        %v1380 = vsub.f32 %v1114, %v1379
        %1381 = vmatpush1.msra.mxu0 %v1380
        %1382 = vmatprep.subr.mxu0 0.0
        %v1383 = vand.u32 %v1115, 4294901760
        %v1384 = vsub.f32 %v1115, %v1383
        %1385 = vmatpush1.msra.mxu0 %v1384
        %1386 = vmatprep.subr.mxu0 0.0
        %v1387 = vand.u32 %v1116, 4294901760
        %v1388 = vsub.f32 %v1116, %v1387
        %1389 = vmatpush1.msra.mxu0 %v1388
        %1390 = vmatprep.subr.mxu0 0.0
        %v1391 = vand.u32 %v1117, 4294901760
        %v1392 = vsub.f32 %v1117, %v1391
        %1393 = vmatpush1.msra.mxu0 %v1392
        %1394 = vmatprep.subr.mxu0 0.0
        %v1395 = vand.u32 %v1118, 4294901760
        %v1396 = vsub.f32 %v1118, %v1395
        %1397 = vmatpush1.msra.mxu0 %v1396
        %1398 = vmatprep.subr.mxu0 0.0
        %v1399 = vand.u32 %v1119, 4294901760
        %v1400 = vsub.f32 %v1119, %v1399
        %1401 = vmatpush1.msra.mxu0 %v1400
        %1402 = vmatprep.subr.mxu0 0.0
        %v1403 = vand.u32 %v1120, 4294901760
        %v1404 = vsub.f32 %v1120, %v1403
        %1405 = vmatpush1.msra.mxu0 %v1404
        %1406 = vmatprep.subr.mxu0 0.0
        %v1407 = vand.u32 %v1121, 4294901760
        %v1408 = vsub.f32 %v1121, %v1407
        %1409 = vmatpush1.msra.mxu0 %v1408
        %1410 = vmatprep.subr.mxu0 0.0
        %v1411 = vand.u32 %v1122, 4294901760
        %v1412 = vsub.f32 %v1122, %v1411
        %1413 = vmatpush1.msra.mxu0 %v1412
        %1414 = vmatprep.subr.mxu0 0.0
        %v1415 = vand.u32 %v1123, 4294901760
        %v1416 = vsub.f32 %v1123, %v1415
        %1417 = vmatpush1.msra.mxu0 %v1416
        %1418 = vmatprep.subr.mxu0 0.0
        %v1419 = vand.u32 %v1124, 4294901760
        %v1420 = vsub.f32 %v1124, %v1419
        %1421 = vmatpush1.msra.mxu0 %v1420
        %1422 = vmatprep.subr.mxu0 0.0
        %v1423 = vand.u32 %v1125, 4294901760
        %v1424 = vsub.f32 %v1125, %v1423
        %1425 = vmatpush1.msra.mxu0 %v1424
        %1426 = vmatprep.subr.mxu0 0.0
        %v1427 = vand.u32 %v1126, 4294901760
        %v1428 = vsub.f32 %v1126, %v1427
        %1429 = vmatpush1.msra.mxu0 %v1428
        %1430 = vmatprep.subr.mxu0 0.0
        %v1431 = vand.u32 %v1127, 4294901760
        %v1432 = vsub.f32 %v1127, %v1431
        %1433 = vmatpush1.msra.mxu0 %v1432
        %1434 = vmatprep.subr.mxu0 0.0
        %1435 = vmatpush1.msra.mxu0 0.0
        %1436 = vmatprep.subr.mxu0 0.0
        %1437 = vmatpush1.msra.mxu0 0.0
        %1438 = vmatprep.subr.mxu0 0.0
        %1439 = vmatpush1.msra.mxu0 0.0
        %1440 = vmatprep.subr.mxu0 0.0
        %1441 = vmatpush1.msra.mxu0 0.0
        %1442 = vmatprep.subr.mxu0 0.0
        %1443 = vmatpush1.msra.mxu0 0.0
        %1444 = vmatprep.subr.mxu0 0.0
        %1445 = vmatpush1.msra.mxu0 0.0
        %1446 = vmatprep.subr.mxu0 0.0
        %1447 = vmatpush1.msra.mxu0 0.0
        %1448 = vmatprep.subr.mxu0 0.0
        %1449 = vmatpush1.msra.mxu0 0.0
        %1450 = vmatprep.subr.mxu0 0.0
        %1451 = vmatpush1.msra.mxu0 0.0
        %1452 = vmatprep.subr.mxu0 0.0
        %1453 = vmatpush1.msra.mxu0 0.0
        %1454 = vmatprep.subr.mxu0 0.0
        %1455 = vmatpush1.msra.mxu0 0.0
        %1456 = vmatprep.subr.mxu0 0.0
        %1457 = vmatpush1.msra.mxu0 0.0
        %1458 = vmatprep.subr.mxu0 0.0
        %1459 = vmatpush1.msra.mxu0 0.0
        %1460 = vmatprep.subr.mxu0 0.0
        %1461 = vmatpush1.msra.mxu0 0.0
        %1462 = vmatprep.subr.mxu0 0.0
        %1463 = vmatpush1.msra.mxu0 0.0
        %1464 = vmatprep.subr.mxu0 0.0
        %1465 = vmatpush1.msra.mxu0 0.0
        %1466 = vmatprep.mubr.f32.mxu0 0.0
        %v1467 = vand.u32 %v1110, 4294901760
        %v1468 = vsub.f32 %v1110, %v1467
        %1469 = vmatmul.mubr.f32.gmra.mrb[0].mxu0 %v1468
        %v1470 = vpop.f32.mrb[0].mxu0
        %v1471 = vadd.f32 %v1367, %v1470
        %v1472 = vpop.f32.mrb[0].mxu0
        %1473 = vdwg.mxu0
        %1474 = vmatprep.subr.mxu0 0.0
        %v1475 = vand.u32 %v1112, 4294901760
        %1476 = vmatpush1.msra.mxu0 %v1475
        %1477 = vmatprep.subr.mxu0 0.0
        %v1478 = vand.u32 %v1113, 4294901760
        %1479 = vmatpush1.msra.mxu0 %v1478
        %1480 = vmatprep.subr.mxu0 0.0
        %v1481 = vand.u32 %v1114, 4294901760
        %1482 = vmatpush1.msra.mxu0 %v1481
        %1483 = vmatprep.subr.mxu0 0.0
        %v1484 = vand.u32 %v1115, 4294901760
        %1485 = vmatpush1.msra.mxu0 %v1484
        %1486 = vmatprep.subr.mxu0 0.0
        %v1487 = vand.u32 %v1116, 4294901760
        %1488 = vmatpush1.msra.mxu0 %v1487
        %1489 = vmatprep.subr.mxu0 0.0
        %v1490 = vand.u32 %v1117, 4294901760
        %1491 = vmatpush1.msra.mxu0 %v1490
        %1492 = vmatprep.subr.mxu0 0.0
        %v1493 = vand.u32 %v1118, 4294901760
        %1494 = vmatpush1.msra.mxu0 %v1493
        %1495 = vmatprep.subr.mxu0 0.0
        %v1496 = vand.u32 %v1119, 4294901760
        %1497 = vmatpush1.msra.mxu0 %v1496
        %1498 = vmatprep.subr.mxu0 0.0
        %v1499 = vand.u32 %v1120, 4294901760
        %1500 = vmatpush1.msra.mxu0 %v1499
        %1501 = vmatprep.subr.mxu0 0.0
        %v1502 = vand.u32 %v1121, 4294901760
        %1503 = vmatpush1.msra.mxu0 %v1502
        %1504 = vmatprep.subr.mxu0 0.0
        %v1505 = vand.u32 %v1122, 4294901760
        %1506 = vmatpush1.msra.mxu0 %v1505
        %1507 = vmatprep.subr.mxu0 0.0
        %v1508 = vand.u32 %v1123, 4294901760
        %1509 = vmatpush1.msra.mxu0 %v1508
        %1510 = vmatprep.subr.mxu0 0.0
        %v1511 = vand.u32 %v1124, 4294901760
        %1512 = vmatpush1.msra.mxu0 %v1511
        %1513 = vmatprep.subr.mxu0 0.0
        %v1514 = vand.u32 %v1125, 4294901760
        %1515 = vmatpush1.msra.mxu0 %v1514
        %1516 = vmatprep.subr.mxu0 0.0
        %v1517 = vand.u32 %v1126, 4294901760
        %1518 = vmatpush1.msra.mxu0 %v1517
        %1519 = vmatprep.subr.mxu0 0.0
        %v1520 = vand.u32 %v1127, 4294901760
        %1521 = vmatpush1.msra.mxu0 %v1520
        %1522 = vmatprep.subr.mxu0 0.0
        %1523 = vmatpush1.msra.mxu0 0.0
        %1524 = vmatprep.subr.mxu0 0.0
        %1525 = vmatpush1.msra.mxu0 0.0
        %1526 = vmatprep.subr.mxu0 0.0
        %1527 = vmatpush1.msra.mxu0 0.0
        %1528 = vmatprep.subr.mxu0 0.0
        %1529 = vmatpush1.msra.mxu0 0.0
        %1530 = vmatprep.subr.mxu0 0.0
        %1531 = vmatpush1.msra.mxu0 0.0
        %1532 = vmatprep.subr.mxu0 0.0
        %1533 = vmatpush1.msra.mxu0 0.0
        %1534 = vmatprep.subr.mxu0 0.0
        %1535 = vmatpush1.msra.mxu0 0.0
        %1536 = vmatprep.subr.mxu0 0.0
        %1537 = vmatpush1.msra.mxu0 0.0
        %1538 = vmatprep.subr.mxu0 0.0
        %1539 = vmatpush1.msra.mxu0 0.0
        %1540 = vmatprep.subr.mxu0 0.0
        %1541 = vmatpush1.msra.mxu0 0.0
        %1542 = vmatprep.subr.mxu0 0.0
        %1543 = vmatpush1.msra.mxu0 0.0
        %1544 = vmatprep.subr.mxu0 0.0
        %1545 = vmatpush1.msra.mxu0 0.0
        %1546 = vmatprep.subr.mxu0 0.0
        %1547 = vmatpush1.msra.mxu0 0.0
        %1548 = vmatprep.subr.mxu0 0.0
        %1549 = vmatpush1.msra.mxu0 0.0
        %1550 = vmatprep.subr.mxu0 0.0
        %1551 = vmatpush1.msra.mxu0 0.0
        %1552 = vmatprep.subr.mxu0 0.0
        %1553 = vmatpush1.msra.mxu0 0.0
        %1554 = vmatprep.mubr.f32.mxu0 0.0
        %v1555 = vand.u32 %v1110, 4294901760
        %v1556 = vsub.f32 %v1110, %v1555
        %v1557 = vand.u32 %v1556, 4294901760
        %1558 = vmatmul.mubr.f32.gmra.mrb[0].mxu0 %v1557
        %v1559 = vpop.f32.mrb[0].mxu0
        %v1560 = vadd.f32 %v1471, %v1559
        %v1561 = vpop.f32.mrb[0].mxu0
        %1562 = vdwg.mxu0
        %1563 = vmatprep.subr.mxu0 0.0
        %v1564 = vand.u32 %v1112, 4294901760
        %v1565 = vsub.f32 %v1112, %v1564
        %v1566 = vand.u32 %v1565, 4294901760
        %1567 = vmatpush1.msra.mxu0 %v1566
        %1568 = vmatprep.subr.mxu0 0.0
        %v1569 = vand.u32 %v1113, 4294901760
        %v1570 = vsub.f32 %v1113, %v1569
        %v1571 = vand.u32 %v1570, 4294901760
        %1572 = vmatpush1.msra.mxu0 %v1571
        %1573 = vmatprep.subr.mxu0 0.0
        %v1574 = vand.u32 %v1114, 4294901760
        %v1575 = vsub.f32 %v1114, %v1574
        %v1576 = vand.u32 %v1575, 4294901760
        %1577 = vmatpush1.msra.mxu0 %v1576
        %1578 = vmatprep.subr.mxu0 0.0
        %v1579 = vand.u32 %v1115, 4294901760
        %v1580 = vsub.f32 %v1115, %v1579
        %v1581 = vand.u32 %v1580, 4294901760
        %1582 = vmatpush1.msra.mxu0 %v1581
        %1583 = vmatprep.subr.mxu0 0.0
        %v1584 = vand.u32 %v1116, 4294901760
        %v1585 = vsub.f32 %v1116, %v1584
        %v1586 = vand.u32 %v1585, 4294901760
        %1587 = vmatpush1.msra.mxu0 %v1586
        %1588 = vmatprep.subr.mxu0 0.0
        %v1589 = vand.u32 %v1117, 4294901760
        %v1590 = vsub.f32 %v1117, %v1589
        %v1591 = vand.u32 %v1590, 4294901760
        %1592 = vmatpush1.msra.mxu0 %v1591
        %1593 = vmatprep.subr.mxu0 0.0
        %v1594 = vand.u32 %v1118, 4294901760
        %v1595 = vsub.f32 %v1118, %v1594
        %v1596 = vand.u32 %v1595, 4294901760
        %1597 = vmatpush1.msra.mxu0 %v1596
        %1598 = vmatprep.subr.mxu0 0.0
        %v1599 = vand.u32 %v1119, 4294901760
        %v1600 = vsub.f32 %v1119, %v1599
        %v1601 = vand.u32 %v1600, 4294901760
        %1602 = vmatpush1.msra.mxu0 %v1601
        %1603 = vmatprep.subr.mxu0 0.0
        %v1604 = vand.u32 %v1120, 4294901760
        %v1605 = vsub.f32 %v1120, %v1604
        %v1606 = vand.u32 %v1605, 4294901760
        %1607 = vmatpush1.msra.mxu0 %v1606
        %1608 = vmatprep.subr.mxu0 0.0
        %v1609 = vand.u32 %v1121, 4294901760
        %v1610 = vsub.f32 %v1121, %v1609
        %v1611 = vand.u32 %v1610, 4294901760
        %1612 = vmatpush1.msra.mxu0 %v1611
        %1613 = vmatprep.subr.mxu0 0.0
        %v1614 = vand.u32 %v1122, 4294901760
        %v1615 = vsub.f32 %v1122, %v1614
        %v1616 = vand.u32 %v1615, 4294901760
        %1617 = vmatpush1.msra.mxu0 %v1616
        %1618 = vmatprep.subr.mxu0 0.0
        %v1619 = vand.u32 %v1123, 4294901760
        %v1620 = vsub.f32 %v1123, %v1619
        %v1621 = vand.u32 %v1620, 4294901760
        %1622 = vmatpush1.msra.mxu0 %v1621
        %1623 = vmatprep.subr.mxu0 0.0
        %v1624 = vand.u32 %v1124, 4294901760
        %v1625 = vsub.f32 %v1124, %v1624
        %v1626 = vand.u32 %v1625, 4294901760
        %1627 = vmatpush1.msra.mxu0 %v1626
        %1628 = vmatprep.subr.mxu0 0.0
        %v1629 = vand.u32 %v1125, 4294901760
        %v1630 = vsub.f32 %v1125, %v1629
        %v1631 = vand.u32 %v1630, 4294901760
        %1632 = vmatpush1.msra.mxu0 %v1631
        %1633 = vmatprep.subr.mxu0 0.0
        %v1634 = vand.u32 %v1126, 4294901760
        %v1635 = vsub.f32 %v1126, %v1634
        %v1636 = vand.u32 %v1635, 4294901760
        %1637 = vmatpush1.msra.mxu0 %v1636
        %1638 = vmatprep.subr.mxu0 0.0
        %v1639 = vand.u32 %v1127, 4294901760
        %v1640 = vsub.f32 %v1127, %v1639
        %v1641 = vand.u32 %v1640, 4294901760
        %1642 = vmatpush1.msra.mxu0 %v1641
        %1643 = vmatprep.subr.mxu0 0.0
        %1644 = vmatpush1.msra.mxu0 0.0
        %1645 = vmatprep.subr.mxu0 0.0
        %1646 = vmatpush1.msra.mxu0 0.0
        %1647 = vmatprep.subr.mxu0 0.0
        %1648 = vmatpush1.msra.mxu0 0.0
        %1649 = vmatprep.subr.mxu0 0.0
        %1650 = vmatpush1.msra.mxu0 0.0
        %1651 = vmatprep.subr.mxu0 0.0
        %1652 = vmatpush1.msra.mxu0 0.0
        %1653 = vmatprep.subr.mxu0 0.0
        %1654 = vmatpush1.msra.mxu0 0.0
        %1655 = vmatprep.subr.mxu0 0.0
        %1656 = vmatpush1.msra.mxu0 0.0
        %1657 = vmatprep.subr.mxu0 0.0
        %1658 = vmatpush1.msra.mxu0 0.0
        %1659 = vmatprep.subr.mxu0 0.0
        %1660 = vmatpush1.msra.mxu0 0.0
        %1661 = vmatprep.subr.mxu0 0.0
        %1662 = vmatpush1.msra.mxu0 0.0
        %1663 = vmatprep.subr.mxu0 0.0
        %1664 = vmatpush1.msra.mxu0 0.0
        %1665 = vmatprep.subr.mxu0 0.0
        %1666 = vmatpush1.msra.mxu0 0.0
        %1667 = vmatprep.subr.mxu0 0.0
        %1668 = vmatpush1.msra.mxu0 0.0
        %1669 = vmatprep.subr.mxu0 0.0
        %1670 = vmatpush1.msra.mxu0 0.0
        %1671 = vmatprep.subr.mxu0 0.0
        %1672 = vmatpush1.msra.mxu0 0.0
        %1673 = vmatprep.subr.mxu0 0.0
        %1674 = vmatpush1.msra.mxu0 0.0
        %1675 = vmatprep.mubr.f32.mxu0 0.0
        %v1676 = vand.u32 %v1110, 4294901760
        %1677 = vmatmul.mubr.f32.gmra.mrb[0].mxu0 %v1676
        %v1678 = vpop.f32.mrb[0].mxu0
        %v1679 = vadd.f32 %v1560, %v1678
        %v1680 = vpop.f32.mrb[0].mxu0
        %1681 = vdwg.mxu0
        %1682 = vmatprep.subr.mxu0 0.0
        %v1683 = vand.u32 %v1112, 4294901760
        %1684 = vmatpush1.msra.mxu0 %v1683
        %1685 = vmatprep.subr.mxu0 0.0
        %v1686 = vand.u32 %v1113, 4294901760
        %1687 = vmatpush1.msra.mxu0 %v1686
        %1688 = vmatprep.subr.mxu0 0.0
        %v1689 = vand.u32 %v1114, 4294901760
        %1690 = vmatpush1.msra.mxu0 %v1689
        %1691 = vmatprep.subr.mxu0 0.0
        %v1692 = vand.u32 %v1115, 4294901760
        %1693 = vmatpush1.msra.mxu0 %v1692
        %1694 = vmatprep.subr.mxu0 0.0
        %v1695 = vand.u32 %v1116, 4294901760
        %1696 = vmatpush1.msra.mxu0 %v1695
        %1697 = vmatprep.subr.mxu0 0.0
        %v1698 = vand.u32 %v1117, 4294901760
        %1699 = vmatpush1.msra.mxu0 %v1698
        %1700 = vmatprep.subr.mxu0 0.0
        %v1701 = vand.u32 %v1118, 4294901760
        %1702 = vmatpush1.msra.mxu0 %v1701
        %1703 = vmatprep.subr.mxu0 0.0
        %v1704 = vand.u32 %v1119, 4294901760
        %1705 = vmatpush1.msra.mxu0 %v1704
        %1706 = vmatprep.subr.mxu0 0.0
        %v1707 = vand.u32 %v1120, 4294901760
        %1708 = vmatpush1.msra.mxu0 %v1707
        %1709 = vmatprep.subr.mxu0 0.0
        %v1710 = vand.u32 %v1121, 4294901760
        %1711 = vmatpush1.msra.mxu0 %v1710
        %1712 = vmatprep.subr.mxu0 0.0
        %v1713 = vand.u32 %v1122, 4294901760
        %1714 = vmatpush1.msra.mxu0 %v1713
        %1715 = vmatprep.subr.mxu0 0.0
        %v1716 = vand.u32 %v1123, 4294901760
        %1717 = vmatpush1.msra.mxu0 %v1716
        %1718 = vmatprep.subr.mxu0 0.0
        %v1719 = vand.u32 %v1124, 4294901760
        %1720 = vmatpush1.msra.mxu0 %v1719
        %1721 = vmatprep.subr.mxu0 0.0
        %v1722 = vand.u32 %v1125, 4294901760
        %1723 = vmatpush1.msra.mxu0 %v1722
        %1724 = vmatprep.subr.mxu0 0.0
        %v1725 = vand.u32 %v1126, 4294901760
        %1726 = vmatpush1.msra.mxu0 %v1725
        %1727 = vmatprep.subr.mxu0 0.0
        %v1728 = vand.u32 %v1127, 4294901760
        %1729 = vmatpush1.msra.mxu0 %v1728
        %1730 = vmatprep.subr.mxu0 0.0
        %1731 = vmatpush1.msra.mxu0 0.0
        %1732 = vmatprep.subr.mxu0 0.0
        %1733 = vmatpush1.msra.mxu0 0.0
        %1734 = vmatprep.subr.mxu0 0.0
        %1735 = vmatpush1.msra.mxu0 0.0
        %1736 = vmatprep.subr.mxu0 0.0
        %1737 = vmatpush1.msra.mxu0 0.0
        %1738 = vmatprep.subr.mxu0 0.0
        %1739 = vmatpush1.msra.mxu0 0.0
        %1740 = vmatprep.subr.mxu0 0.0
        %1741 = vmatpush1.msra.mxu0 0.0
        %1742 = vmatprep.subr.mxu0 0.0
        %1743 = vmatpush1.msra.mxu0 0.0
        %1744 = vmatprep.subr.mxu0 0.0
        %1745 = vmatpush1.msra.mxu0 0.0
        %1746 = vmatprep.subr.mxu0 0.0
        %1747 = vmatpush1.msra.mxu0 0.0
        %1748 = vmatprep.subr.mxu0 0.0
        %1749 = vmatpush1.msra.mxu0 0.0
        %1750 = vmatprep.subr.mxu0 0.0
        %1751 = vmatpush1.msra.mxu0 0.0
        %1752 = vmatprep.subr.mxu0 0.0
        %1753 = vmatpush1.msra.mxu0 0.0
        %1754 = vmatprep.subr.mxu0 0.0
        %1755 = vmatpush1.msra.mxu0 0.0
        %1756 = vmatprep.subr.mxu0 0.0
        %1757 = vmatpush1.msra.mxu0 0.0
        %1758 = vmatprep.subr.mxu0 0.0
        %1759 = vmatpush1.msra.mxu0 0.0
        %1760 = vmatprep.subr.mxu0 0.0
        %1761 = vmatpush1.msra.mxu0 0.0
        %1762 = vmatprep.mubr.f32.mxu0 0.0
        %v1763 = vand.u32 %v1110, 4294901760
        %1764 = vmatmul.mubr.f32.gmra.mrb[0].mxu0 %v1763
        %v1765 = vpop.f32.mrb[0].mxu0
        %v1766 = vadd.f32 %v1679, %v1765
        %v1767 = vpop.f32.mrb[0].mxu0
        %1768 = vdwg.mxu0
        %v1769 = vadd.f32 %v1111, %v1766
        %1770 = vst [vmem:[#allocation2] sm:$0xff] %v1769
        %p1771 = scmp.eq.s32.totalorder %s35, 1
        // Predicated region
        $region69: #{tpu_custom_call.1} parent=43 // pred_check
          %p1772 = pneg %p1771
        $region70: #{tpu_custom_call.1} parent=43 // pred_check_branch
          %1774 = sbr.rel (%p1772) target = $region72
        $region71: #{tpu_custom_call.1} parent=43 // pred_region
          %v1775 = vld [vmem:[#allocation2] sm:$0xff]
          %v1776 = vld [vmem:[#allocation12] sm:$0x1]
          %v1778 = vlaneseq
          %v1779 = vshrl.u32 %v1778, 7
          %v1780 = vsub.s32 0, %v1779
          %v1781 = vrot.slane %v1776, %v1780
          %v1783 = vadd.f32 %v1775, %v1781
          %1784 = vst [vmem:[%s401] sm:$0xff] %v1783
        $region72: #{tpu_custom_call.1} parent=43 // pred_fallthru
          _
        %s1785 = sand.u32 %s196, 1
        %s1786 = scalar_lea.sflag [#allocation6], %s1785
        %s1787 = sand.u32 %s196, 1
        %s1788 = smul.addr %s1787, 8
        %s1789 = scalar_lea.vmem [#allocation13], %s1788
        // Predicated region
        $region73: #{tpu_custom_call.1} parent=43 // pred_check
          %p1790 = pneg %p206
        $region74: #{tpu_custom_call.1} parent=43 // pred_check_branch
          %1792 = sbr.rel (%p1790) target = $region76
        $region75: #{tpu_custom_call.1} parent=43 // pred_region
          %s1794 = ssub.s32 128, 128
          %1795 = vsyncadd %s1786, %s1794
          %s1796 = smul.addr %s34, 128
          %s1797 = scalar_lea.hbm %s6, %s1796
          %s1799 = sshll.u32 %s1789, 4
          %s1800 = int_to_ptr.vmem [resolvable:$true] %s1799
          %1802 = dma.vmem_to_hbm [thread:$0]  %s1800, 128, %s1797, %s1786
        $region76: #{tpu_custom_call.1} parent=43 // pred_fallthru
          _
      $region44: #{tpu_custom_call.1} parent=5 // pred_fallthru
        _
      %p1803 = scmp.le.s32.totalorder 2, %s25
      // Predicated region
      $region77: #{tpu_custom_call.1} parent=5 // pred_check
        %p1804 = pneg %p1803
      $region78: #{tpu_custom_call.1} parent=5 // pred_check_branch
        %1806 = sbr.rel (%p1804) target = $region80
      $region79: #{tpu_custom_call.1} parent=5 // pred_region
        %s1807 = ssub.s32 %s25, 2
        // Predicated region
        $region81: #{tpu_custom_call.1} parent=79 // pred_check
          %p1808 = pneg %p212
        $region82: #{tpu_custom_call.1} parent=79 // pred_check_branch
          %1810 = sbr.rel (%p1808) target = $region84
        $region83: #{tpu_custom_call.1} parent=79 // pred_region
          %s1811 = sand.u32 %s197, 1
          %s1812 = scalar_lea.sflag [#allocation6], %s1811
          %s1813 = sand.u32 %s197, 1
          %s1814 = smul.addr %s1813, 8
          %s1815 = scalar_lea.vmem [#allocation13], %s1814
          %1816 = dma.done %s1812, 128
        $region84: #{tpu_custom_call.1} parent=79 // pred_fallthru
          _
      $region80: #{tpu_custom_call.1} parent=5 // pred_fallthru
        _
    $region6: #{tpu_custom_call.1} parent=1 // loop_footer
      %s29 = sadd.s32 1, %s25
    $region7: #{tpu_custom_call.1} parent=1 // loop_footer_branch
      %24 = sbr.rel target = $region3
    $region8: #{tpu_custom_call.1} parent=1 // loop_exit
      _
    %1817 = vsyncpa [#allocation5], 1
    %s1818 = scalar_lea.sflag [#allocation5], 1
    %1819 = vsyncpa %s1818, 1
    %1820 = vsyncpa [#allocation8], 1
    %s1821 = scalar_lea.sflag [#allocation8], 1
    %1822 = vsyncpa %s1821, 1
    %1823 = vsyncpa [#allocation11], 1
    %s1824 = scalar_lea.sflag [#allocation11], 1
    %1825 = vsyncpa %s1824, 1
    %1826 = vsyncpa [#allocation6], 1
    %s1827 = scalar_lea.sflag [#allocation6], 1
    %1828 = vsyncpa %s1827, 1

</llo_original>
